<compile_context>
chip_gen: v7x
topology: tpu7x:2x2x1
jax: 0.10.0
libtpu: 0.0.40
codegen_flags: <defaults>
</compile_context>

<pallas_src>
import functools

import jax
import jax.numpy as jnp
import numpy as np
from jax.experimental import pallas as pl
from jax.experimental.pallas import tpu as pltpu  # noqa: F401  (TPU backend)


# ----------------------------------------------------------------------------
# Fused Pallas kernel: whole InceptionBlock, whole (small) batch, one step.
# ----------------------------------------------------------------------------
def _inception_kernel(xf_ref, w1_ref, b1_ref, m3_ref, b3_ref, m5_ref, b5_ref,
                      wp_ref, bp_ref, o1_ref, o2_ref, o3_ref, o4_ref, *,
                      N, H, W, Cin, out_1x1, reduce_3x3, out_3x3,
                      reduce_5x5, out_5x5, pool_proj):
    NH = N * H
    xf = xf_ref[...]                                     # (N, H, W*Cin) folded

    # ---- branch1 + 3x3-reduce + 5x5-reduce: one merged folded 1x1 matmul ----
    y = jnp.dot(xf.reshape(NH, W * Cin), w1_ref[...],
                preferred_element_type=jnp.float32) + b1_ref[...]
    y = jnp.maximum(y, 0.0)                              # (NH, W*(o1+r3+r5))
    br1 = y[:, :W * out_1x1]                             # (NH, W*o1)
    r3f = y[:, W * out_1x1:W * (out_1x1 + reduce_3x3)].reshape(
        N, H, W * reduce_3x3)
    r5f = y[:, W * (out_1x1 + reduce_3x3):].reshape(N, H, W * reduce_5x5)

    # ---- branch2: 3x3 conv = 3 row block-Toeplitz matmuls (W taps + W-pad
    #      are encoded in m3; only H needs 1 zero row of padding each side) ----
    z3 = jnp.zeros((N, 1, W * reduce_3x3), jnp.float32)
    p3 = jnp.concatenate([z3, r3f, z3], axis=1)          # (N, H+2, W*r3)
    br2 = b3_ref[...]
    for ki in range(3):
        br2 = br2 + jnp.dot(
            p3[:, ki:ki + H, :].reshape(NH, W * reduce_3x3), m3_ref[ki],
            preferred_element_type=jnp.float32)
    br2 = jnp.maximum(br2, 0.0)                          # (NH, W*out_3x3)

    # ---- branch3: 5x5 conv = 5 row block-Toeplitz matmuls ----
    z5 = jnp.zeros((N, 2, W * reduce_5x5), jnp.float32)
    p5 = jnp.concatenate([z5, r5f, z5], axis=1)          # (N, H+4, W*r5)
    br3 = b5_ref[...]
    for ki in range(5):
        br3 = br3 + jnp.dot(
            p5[:, ki:ki + H, :].reshape(NH, W * reduce_5x5), m5_ref[ki],
            preferred_element_type=jnp.float32)
    br3 = jnp.maximum(br3, 0.0)                          # (NH, W*out_5x5)

    # ---- branch4: 3x3 s1 p1 max-pool (9 shifted lane-dense maxes) fused
    #      with the folded 1x1 projection ----
    ninf = jnp.float32(-jnp.inf)
    cpad = jnp.full((N, H, Cin), ninf, jnp.float32)
    xp = jnp.concatenate([cpad, xf, cpad], axis=2)       # (N, H, (W+2)*Cin)
    rpad = jnp.full((N, 1, (W + 2) * Cin), ninf, jnp.float32)
    xp = jnp.concatenate([rpad, xp, rpad], axis=1)       # (N, H+2, (W+2)*Cin)
    pooled = xf                                          # center tap (1, 1)
    for ki in range(3):
        for kj in range(3):
            if ki == 1 and kj == 1:
                continue
            pooled = jnp.maximum(
                pooled, xp[:, ki:ki + H, kj * Cin:(kj + W) * Cin])
    br4 = jnp.maximum(
        jnp.dot(pooled.reshape(NH, W * Cin), wp_ref[...],
                preferred_element_type=jnp.float32) + bp_ref[...], 0.0)

    # ---- lane-dense per-branch writeback (W*Ck = 128 -> unmasked stores) ----
    o1_ref[...] = br1.reshape(N, H, W * out_1x1)
    o2_ref[...] = br2.reshape(N, H, W * out_3x3)
    o3_ref[...] = br3.reshape(N, H, W * out_5x5)
    o4_ref[...] = br4.reshape(N, H, W * pool_proj)


# ----------------------------------------------------------------------------
# Host-side weight folding for the lane-folded (rows=N*H, lanes=W*C) layout.
# ----------------------------------------------------------------------------
def _fold_1x1(w, W_):
    """(Cin, Cout) -> block-diagonal (W*Cin, W*Cout) acting per spatial column."""
    cin, cout = w.shape
    eye = jnp.asarray(np.eye(W_, dtype=np.float32))
    return jnp.einsum("yx,co->ycxo", eye, w).reshape(W_ * cin, W_ * cout)


def _fold_conv_rows(w, W_):
    """HWIO (KH,KW,Cr,Cout) -> (KH, W*Cr, W*Cout) banded block-Toeplitz per
    kernel row; the band encodes the column taps and the W zero-padding."""
    kh, kw, cr, cout = w.shape
    pad = (kw - 1) // 2
    sel = np.zeros((kw, W_, W_), dtype=np.float32)
    for kj in range(kw):
        for x in range(W_):
            xin = x + kj - pad
            if 0 <= xin < W_:
                sel[kj, xin, x] = 1.0
    sel = jnp.asarray(sel)
    return jnp.einsum("kyx,ikco->iycxo", sel, w).reshape(kh, W_ * cr, W_ * cout)


def _fold_bias(b, W_):
    """(Cout,) -> (1, W*Cout) bias in (x, channel) folded lane order."""
    return jnp.tile(b, W_)[None, :]


# ----------------------------------------------------------------------------
# Wrapper: weight repacking + single gridless pallas_call.
# ----------------------------------------------------------------------------
def inception_block(x_nchw, p):
    x = jnp.transpose(x_nchw, (0, 2, 3, 1)).astype(jnp.float32)   # NHWC
    N, H, W, Cin = x.shape
    out_1x1 = p["w1"].shape[-1]
    reduce_3x3 = p["w2r"].shape[-1]
    out_3x3 = p["w2"].shape[-1]
    reduce_5x5 = p["w3r"].shape[-1]
    out_5x5 = p["w3"].shape[-1]
    pool_proj = p["w4"].shape[-1]

    xf = x.reshape(N, H, W * Cin)                                  # lane-folded

    # Merged [branch1 | 3x3-reduce | 5x5-reduce] 1x1 conv, block-diagonal.
    w1big = jnp.concatenate(
        [_fold_1x1(p["w1"].reshape(Cin, out_1x1), W),
         _fold_1x1(p["w2r"].reshape(Cin, reduce_3x3), W),
         _fold_1x1(p["w3r"].reshape(Cin, reduce_5x5), W)], axis=1)
    b1big = jnp.concatenate(
        [_fold_bias(p["b1"], W), _fold_bias(p["b2r"], W),
         _fold_bias(p["b3r"], W)], axis=1)

    m3 = _fold_conv_rows(p["w2"], W)
    b3 = _fold_bias(p["b2"], W)
    m5 = _fold_conv_rows(p["w3"], W)
    b5 = _fold_bias(p["b3"], W)
    wp = _fold_1x1(p["w4"].reshape(Cin, pool_proj), W)
    bp = _fold_bias(p["b4"], W)

    kernel = functools.partial(
        _inception_kernel, N=N, H=H, W=W, Cin=Cin,
        out_1x1=out_1x1, reduce_3x3=reduce_3x3, out_3x3=out_3x3,
        reduce_5x5=reduce_5x5, out_5x5=out_5x5, pool_proj=pool_proj)

    out_shapes = (
        jax.ShapeDtypeStruct((N, H, W * out_1x1), jnp.float32),
        jax.ShapeDtypeStruct((N, H, W * out_3x3), jnp.float32),
        jax.ShapeDtypeStruct((N, H, W * out_5x5), jnp.float32),
        jax.ShapeDtypeStruct((N, H, W * pool_proj), jnp.float32),
    )

    # Advisory cost estimate for XLA scheduling around the custom call.
    NH = N * H
    flops = 2 * NH * (W * Cin) * (W * (out_1x1 + reduce_3x3 + reduce_5x5))
    flops += 2 * NH * (W * reduce_3x3) * (W * out_3x3) * 3
    flops += 2 * NH * (W * reduce_5x5) * (W * out_5x5) * 5
    flops += 2 * NH * (W * Cin) * (W * pool_proj)
    in_bytes = sum(int(np.prod(a.shape)) * 4
                   for a in (xf, w1big, b1big, m3, b3, m5, b5, wp, bp))
    out_bytes = sum(int(np.prod(s.shape)) * 4 for s in out_shapes)

    # Single grid step: batch folded into the matmul M dimension (N*H rows);
    # all operands live in VMEM for the whole call, no scratch needed.
    # For v7x megacore at real sizes, add a "parallel" row-band grid axis.
    o1, o2, o3, o4 = pl.pallas_call(
        kernel,
        out_shape=out_shapes,
        cost_estimate=pl.CostEstimate(flops=flops, transcendentals=0,
                                      bytes_accessed=in_bytes + out_bytes),
    )(xf, w1big, b1big, m3, b3, m5, b5, wp, bp)

    # Unfold lane-folded slabs and emit the NCHW channel concat (XLA side).
    def unfold(o, ck):
        return jnp.transpose(o.reshape(N, H, W, ck), (0, 3, 1, 2))

    return jnp.concatenate(
        [unfold(o1, out_1x1), unfold(o2, out_3x3),
         unfold(o3, out_5x5), unfold(o4, pool_proj)], axis=1)


# ----------------------------------------------------------------------------
# Parameter init (synthetic, HWIO layout, float32)
# ----------------------------------------------------------------------------
def init_inception_params(key, in_channels, out_1x1, reduce_3x3, out_3x3,
                          reduce_5x5, out_5x5, pool_proj):
    def conv_p(k, kh, cin, cout):
        kw_, kb_ = jax.random.split(k)
        w = jax.random.normal(kw_, (kh, kh, cin, cout), jnp.float32) * 0.1
        b = jax.random.normal(kb_, (cout,), jnp.float32) * 0.1
        return w, b

    keys = jax.random.split(key, 6)
    p = {}
    p["w1"], p["b1"] = conv_p(keys[0], 1, in_channels, out_1x1)        # branch1
    p["w2r"], p["b2r"] = conv_p(keys[1], 1, in_channels, reduce_3x3)   # b2 reduce
    p["w2"], p["b2"] = conv_p(keys[2], 3, reduce_3x3, out_3x3)         # b2 3x3
    p["w3r"], p["b3r"] = conv_p(keys[3], 1, in_channels, reduce_5x5)   # b3 reduce
    p["w3"], p["b3"] = conv_p(keys[4], 5, reduce_5x5, out_5x5)         # b3 5x5
    p["w4"], p["b4"] = conv_p(keys[5], 1, in_channels, pool_proj)      # b4 proj
    return p


# ----------------------------------------------------------------------------
# Pure-JAX reference (correctness check)
# ----------------------------------------------------------------------------
def _ref_conv_relu(x, w, b, ksize):
    pad = (ksize - 1) // 2
    y = jax.lax.conv_general_dilated(
        x, w, window_strides=(1, 1),
        padding=((pad, pad), (pad, pad)),
        dimension_numbers=("NHWC", "HWIO", "NHWC"))
    return jax.nn.relu(y + b)


def _ref_inception(x_nchw, p):
    x = jnp.transpose(x_nchw, (0, 2, 3, 1)).astype(jnp.float32)
    b1 = _ref_conv_relu(x, p["w1"], p["b1"], 1)
    b2 = _ref_conv_relu(_ref_conv_relu(x, p["w2r"], p["b2r"], 1),
                        p["w2"], p["b2"], 3)
    b3 = _ref_conv_relu(_ref_conv_relu(x, p["w3r"], p["b3r"], 1),
                        p["w3"], p["b3"], 5)
    xp = jax.lax.reduce_window(x, -jnp.inf, jax.lax.max,
                               (1, 3, 3, 1), (1, 1, 1, 1),
                               ((0, 0), (1, 1), (1, 1), (0, 0)))
    b4 = _ref_conv_relu(xp, p["w4"], p["b4"], 1)
    out = jnp.concatenate([b1, b2, b3, b4], axis=-1)
    return jnp.transpose(out, (0, 3, 1, 2))


# ----------------------------------------------------------------------------
if __name__ == "__main__":
    key = jax.random.PRNGKey(0)
    k_x, k_p = jax.random.split(key)

    # Small shapes: batch=2, in_channels=4, spatial=16x16.
    N, Cin, H, W = 2, 4, 16, 16
    out_1x1, reduce_3x3, out_3x3 = 8, 4, 8
    reduce_5x5, out_5x5, pool_proj = 4, 8, 8

    x = jax.random.normal(k_x, (N, Cin, H, W), jnp.float32)
    params = init_inception_params(k_p, Cin, out_1x1, reduce_3x3, out_3x3,
                                   reduce_5x5, out_5x5, pool_proj)

    out = jax.jit(inception_block)(x, params)
    out = jax.block_until_ready(out)

    expected_shape = (N, out_1x1 + out_3x3 + out_5x5 + pool_proj, H, W)
    assert out.shape == expected_shape, (out.shape, expected_shape)

    ref = jax.block_until_ready(_ref_inception(x, params))
    np.testing.assert_allclose(np.asarray(out), np.asarray(ref),
                               rtol=1e-2, atol=1e-2)

    print("KERNEL_OK")
</pallas_src>

<mosaic_0001>
module attributes {stable_mosaic.version = 11 : i64} {
  func.func @_inception_kernel(%arg0: memref<2x16x64xf32, #tpu.memory_space<vmem>>, %arg1: memref<64x256xf32, #tpu.memory_space<vmem>>, %arg2: memref<1x256xf32, #tpu.memory_space<vmem>>, %arg3: memref<3x64x128xf32, #tpu.memory_space<vmem>>, %arg4: memref<1x128xf32, #tpu.memory_space<vmem>>, %arg5: memref<5x64x128xf32, #tpu.memory_space<vmem>>, %arg6: memref<1x128xf32, #tpu.memory_space<vmem>>, %arg7: memref<64x128xf32, #tpu.memory_space<vmem>>, %arg8: memref<1x128xf32, #tpu.memory_space<vmem>>, %arg9: memref<2x16x128xf32, #tpu.memory_space<vmem>>, %arg10: memref<2x16x128xf32, #tpu.memory_space<vmem>>, %arg11: memref<2x16x128xf32, #tpu.memory_space<vmem>>, %arg12: memref<2x16x128xf32, #tpu.memory_space<vmem>>) attributes {dimension_semantics = [], scalar_prefetch = 0 : i64, scratch_operands = 0 : i64, tpu.core_type = #tpu.core_type<tc>} {
    %c0 = arith.constant 0 : index
    %c0_0 = arith.constant 0 : index
    %c0_1 = arith.constant 0 : index
    %0 = vector.load %arg0[%c0, %c0_0, %c0_1] : memref<2x16x64xf32, #tpu.memory_space<vmem>>, vector<2x16x64xf32>
    %1 = vector.shape_cast %0 : vector<2x16x64xf32> to vector<32x64xf32>
    %c0_2 = arith.constant 0 : index
    %c0_3 = arith.constant 0 : index
    %2 = vector.load %arg1[%c0_2, %c0_3] : memref<64x256xf32, #tpu.memory_space<vmem>>, vector<64x256xf32>
    %cst = arith.constant dense<0.000000e+00> : vector<32x256xf32>
    %3 = tpu.matmul %1, %2, %cst {dimension_numbers = #tpu.dot_dimension_numbers<[1], [0], [0], [1], [0, 0, 1, 1], [], []>} : vector<32x64xf32>, vector<64x256xf32>, vector<32x256xf32> -> vector<32x256xf32>
    %c0_4 = arith.constant 0 : index
    %c0_5 = arith.constant 0 : index
    %4 = vector.load %arg2[%c0_4, %c0_5] : memref<1x256xf32, #tpu.memory_space<vmem>>, vector<1x256xf32>
    %5 = vector.broadcast %4 : vector<1x256xf32> to vector<32x256xf32>
    %6 = arith.addf %3, %5 : vector<32x256xf32>
    %cst_6 = arith.constant 0.000000e+00 : f32
    %7 = vector.broadcast %cst_6 : f32 to vector<32x256xf32>
    %8 = arith.maximumf %6, %7 : vector<32x256xf32>
    %9 = vector.extract_strided_slice %8 {offsets = [0, 0], sizes = [32, 128], strides = [1, 1]} : vector<32x256xf32> to vector<32x128xf32>
    %10 = vector.extract_strided_slice %8 {offsets = [0, 128], sizes = [32, 64], strides = [1, 1]} : vector<32x256xf32> to vector<32x64xf32>
    %11 = vector.shape_cast %10 : vector<32x64xf32> to vector<2x16x64xf32>
    %12 = vector.extract_strided_slice %8 {offsets = [0, 192], sizes = [32, 64], strides = [1, 1]} : vector<32x256xf32> to vector<32x64xf32>
    %13 = vector.shape_cast %12 : vector<32x64xf32> to vector<2x16x64xf32>
    %cst_7 = arith.constant 0.000000e+00 : f32
    %14 = vector.broadcast %cst_7 : f32 to vector<2x1x64xf32>
    %15 = tpu.concatenate %14, %11, %14 in 1 : vector<2x1x64xf32>, vector<2x16x64xf32>, vector<2x1x64xf32> -> vector<2x18x64xf32>
    %c0_8 = arith.constant 0 : index
    %c0_9 = arith.constant 0 : index
    %16 = vector.load %arg4[%c0_8, %c0_9] : memref<1x128xf32, #tpu.memory_space<vmem>>, vector<1x128xf32>
    %17 = vector.extract_strided_slice %15 {offsets = [0, 0, 0], sizes = [2, 16, 64], strides = [1, 1, 1]} : vector<2x18x64xf32> to vector<2x16x64xf32>
    %18 = vector.shape_cast %17 : vector<2x16x64xf32> to vector<32x64xf32>
    %c0_10 = arith.constant 0 : index
    %c0_11 = arith.constant 0 : index
    %c0_12 = arith.constant 0 : index
    %19 = vector.load %arg3[%c0_10, %c0_11, %c0_12] : memref<3x64x128xf32, #tpu.memory_space<vmem>>, vector<1x64x128xf32>
    %20 = vector.shape_cast %19 : vector<1x64x128xf32> to vector<64x128xf32>
    %cst_13 = arith.constant dense<0.000000e+00> : vector<32x128xf32>
    %21 = tpu.matmul %18, %20, %cst_13 {dimension_numbers = #tpu.dot_dimension_numbers<[1], [0], [0], [1], [0, 0, 1, 1], [], []>} : vector<32x64xf32>, vector<64x128xf32>, vector<32x128xf32> -> vector<32x128xf32>
    %22 = vector.broadcast %16 : vector<1x128xf32> to vector<32x128xf32>
    %23 = arith.addf %22, %21 : vector<32x128xf32>
    %24 = vector.extract_strided_slice %15 {offsets = [0, 1, 0], sizes = [2, 16, 64], strides = [1, 1, 1]} : vector<2x18x64xf32> to vector<2x16x64xf32>
    %25 = vector.shape_cast %24 : vector<2x16x64xf32> to vector<32x64xf32>
    %c1 = arith.constant 1 : index
    %c0_14 = arith.constant 0 : index
    %c0_15 = arith.constant 0 : index
    %26 = vector.load %arg3[%c1, %c0_14, %c0_15] : memref<3x64x128xf32, #tpu.memory_space<vmem>>, vector<1x64x128xf32>
    %27 = vector.shape_cast %26 : vector<1x64x128xf32> to vector<64x128xf32>
    %cst_16 = arith.constant dense<0.000000e+00> : vector<32x128xf32>
    %28 = tpu.matmul %25, %27, %cst_16 {dimension_numbers = #tpu.dot_dimension_numbers<[1], [0], [0], [1], [0, 0, 1, 1], [], []>} : vector<32x64xf32>, vector<64x128xf32>, vector<32x128xf32> -> vector<32x128xf32>
    %29 = arith.addf %23, %28 : vector<32x128xf32>
    %30 = vector.extract_strided_slice %15 {offsets = [0, 2, 0], sizes = [2, 16, 64], strides = [1, 1, 1]} : vector<2x18x64xf32> to vector<2x16x64xf32>
    %31 = vector.shape_cast %30 : vector<2x16x64xf32> to vector<32x64xf32>
    %c2 = arith.constant 2 : index
    %c0_17 = arith.constant 0 : index
    %c0_18 = arith.constant 0 : index
    %32 = vector.load %arg3[%c2, %c0_17, %c0_18] : memref<3x64x128xf32, #tpu.memory_space<vmem>>, vector<1x64x128xf32>
    %33 = vector.shape_cast %32 : vector<1x64x128xf32> to vector<64x128xf32>
    %cst_19 = arith.constant dense<0.000000e+00> : vector<32x128xf32>
    %34 = tpu.matmul %31, %33, %cst_19 {dimension_numbers = #tpu.dot_dimension_numbers<[1], [0], [0], [1], [0, 0, 1, 1], [], []>} : vector<32x64xf32>, vector<64x128xf32>, vector<32x128xf32> -> vector<32x128xf32>
    %35 = arith.addf %29, %34 : vector<32x128xf32>
    %cst_20 = arith.constant 0.000000e+00 : f32
    %36 = vector.broadcast %cst_20 : f32 to vector<32x128xf32>
    %37 = arith.maximumf %35, %36 : vector<32x128xf32>
    %cst_21 = arith.constant 0.000000e+00 : f32
    %38 = vector.broadcast %cst_21 : f32 to vector<2x2x64xf32>
    %39 = tpu.concatenate %38, %13, %38 in 1 : vector<2x2x64xf32>, vector<2x16x64xf32>, vector<2x2x64xf32> -> vector<2x20x64xf32>
    %c0_22 = arith.constant 0 : index
    %c0_23 = arith.constant 0 : index
    %40 = vector.load %arg6[%c0_22, %c0_23] : memref<1x128xf32, #tpu.memory_space<vmem>>, vector<1x128xf32>
    %41 = vector.extract_strided_slice %39 {offsets = [0, 0, 0], sizes = [2, 16, 64], strides = [1, 1, 1]} : vector<2x20x64xf32> to vector<2x16x64xf32>
    %42 = vector.shape_cast %41 : vector<2x16x64xf32> to vector<32x64xf32>
    %c0_24 = arith.constant 0 : index
    %c0_25 = arith.constant 0 : index
    %c0_26 = arith.constant 0 : index
    %43 = vector.load %arg5[%c0_24, %c0_25, %c0_26] : memref<5x64x128xf32, #tpu.memory_space<vmem>>, vector<1x64x128xf32>
    %44 = vector.shape_cast %43 : vector<1x64x128xf32> to vector<64x128xf32>
    %cst_27 = arith.constant dense<0.000000e+00> : vector<32x128xf32>
    %45 = tpu.matmul %42, %44, %cst_27 {dimension_numbers = #tpu.dot_dimension_numbers<[1], [0], [0], [1], [0, 0, 1, 1], [], []>} : vector<32x64xf32>, vector<64x128xf32>, vector<32x128xf32> -> vector<32x128xf32>
    %46 = vector.broadcast %40 : vector<1x128xf32> to vector<32x128xf32>
    %47 = arith.addf %46, %45 : vector<32x128xf32>
    %48 = vector.extract_strided_slice %39 {offsets = [0, 1, 0], sizes = [2, 16, 64], strides = [1, 1, 1]} : vector<2x20x64xf32> to vector<2x16x64xf32>
    %49 = vector.shape_cast %48 : vector<2x16x64xf32> to vector<32x64xf32>
    %c1_28 = arith.constant 1 : index
    %c0_29 = arith.constant 0 : index
    %c0_30 = arith.constant 0 : index
    %50 = vector.load %arg5[%c1_28, %c0_29, %c0_30] : memref<5x64x128xf32, #tpu.memory_space<vmem>>, vector<1x64x128xf32>
    %51 = vector.shape_cast %50 : vector<1x64x128xf32> to vector<64x128xf32>
    %cst_31 = arith.constant dense<0.000000e+00> : vector<32x128xf32>
    %52 = tpu.matmul %49, %51, %cst_31 {dimension_numbers = #tpu.dot_dimension_numbers<[1], [0], [0], [1], [0, 0, 1, 1], [], []>} : vector<32x64xf32>, vector<64x128xf32>, vector<32x128xf32> -> vector<32x128xf32>
    %53 = arith.addf %47, %52 : vector<32x128xf32>
    %54 = vector.extract_strided_slice %39 {offsets = [0, 2, 0], sizes = [2, 16, 64], strides = [1, 1, 1]} : vector<2x20x64xf32> to vector<2x16x64xf32>
    %55 = vector.shape_cast %54 : vector<2x16x64xf32> to vector<32x64xf32>
    %c2_32 = arith.constant 2 : index
    %c0_33 = arith.constant 0 : index
    %c0_34 = arith.constant 0 : index
    %56 = vector.load %arg5[%c2_32, %c0_33, %c0_34] : memref<5x64x128xf32, #tpu.memory_space<vmem>>, vector<1x64x128xf32>
    %57 = vector.shape_cast %56 : vector<1x64x128xf32> to vector<64x128xf32>
    %cst_35 = arith.constant dense<0.000000e+00> : vector<32x128xf32>
    %58 = tpu.matmul %55, %57, %cst_35 {dimension_numbers = #tpu.dot_dimension_numbers<[1], [0], [0], [1], [0, 0, 1, 1], [], []>} : vector<32x64xf32>, vector<64x128xf32>, vector<32x128xf32> -> vector<32x128xf32>
    %59 = arith.addf %53, %58 : vector<32x128xf32>
    %60 = vector.extract_strided_slice %39 {offsets = [0, 3, 0], sizes = [2, 16, 64], strides = [1, 1, 1]} : vector<2x20x64xf32> to vector<2x16x64xf32>
    %61 = vector.shape_cast %60 : vector<2x16x64xf32> to vector<32x64xf32>
    %c3 = arith.constant 3 : index
    %c0_36 = arith.constant 0 : index
    %c0_37 = arith.constant 0 : index
    %62 = vector.load %arg5[%c3, %c0_36, %c0_37] : memref<5x64x128xf32, #tpu.memory_space<vmem>>, vector<1x64x128xf32>
    %63 = vector.shape_cast %62 : vector<1x64x128xf32> to vector<64x128xf32>
    %cst_38 = arith.constant dense<0.000000e+00> : vector<32x128xf32>
    %64 = tpu.matmul %61, %63, %cst_38 {dimension_numbers = #tpu.dot_dimension_numbers<[1], [0], [0], [1], [0, 0, 1, 1], [], []>} : vector<32x64xf32>, vector<64x128xf32>, vector<32x128xf32> -> vector<32x128xf32>
    %65 = arith.addf %59, %64 : vector<32x128xf32>
    %66 = vector.extract_strided_slice %39 {offsets = [0, 4, 0], sizes = [2, 16, 64], strides = [1, 1, 1]} : vector<2x20x64xf32> to vector<2x16x64xf32>
    %67 = vector.shape_cast %66 : vector<2x16x64xf32> to vector<32x64xf32>
    %c4 = arith.constant 4 : index
    %c0_39 = arith.constant 0 : index
    %c0_40 = arith.constant 0 : index
    %68 = vector.load %arg5[%c4, %c0_39, %c0_40] : memref<5x64x128xf32, #tpu.memory_space<vmem>>, vector<1x64x128xf32>
    %69 = vector.shape_cast %68 : vector<1x64x128xf32> to vector<64x128xf32>
    %cst_41 = arith.constant dense<0.000000e+00> : vector<32x128xf32>
    %70 = tpu.matmul %67, %69, %cst_41 {dimension_numbers = #tpu.dot_dimension_numbers<[1], [0], [0], [1], [0, 0, 1, 1], [], []>} : vector<32x64xf32>, vector<64x128xf32>, vector<32x128xf32> -> vector<32x128xf32>
    %71 = arith.addf %65, %70 : vector<32x128xf32>
    %cst_42 = arith.constant 0.000000e+00 : f32
    %72 = vector.broadcast %cst_42 : f32 to vector<32x128xf32>
    %73 = arith.maximumf %71, %72 : vector<32x128xf32>
    %cst_43 = arith.constant 0xFF800000 : f32
    %74 = vector.broadcast %cst_43 : f32 to vector<2x16x4xf32>
    %75 = tpu.concatenate %74, %0, %74 in 2 : vector<2x16x4xf32>, vector<2x16x64xf32>, vector<2x16x4xf32> -> vector<2x16x72xf32>
    %cst_44 = arith.constant 0xFF800000 : f32
    %76 = vector.broadcast %cst_44 : f32 to vector<2x1x72xf32>
    %77 = tpu.concatenate %76, %75, %76 in 1 : vector<2x1x72xf32>, vector<2x16x72xf32>, vector<2x1x72xf32> -> vector<2x18x72xf32>
    %78 = vector.extract_strided_slice %77 {offsets = [0, 0, 0], sizes = [2, 16, 64], strides = [1, 1, 1]} : vector<2x18x72xf32> to vector<2x16x64xf32>
    %79 = arith.maximumf %0, %78 : vector<2x16x64xf32>
    %80 = vector.extract_strided_slice %77 {offsets = [0, 0, 4], sizes = [2, 16, 64], strides = [1, 1, 1]} : vector<2x18x72xf32> to vector<2x16x64xf32>
    %81 = arith.maximumf %79, %80 : vector<2x16x64xf32>
    %82 = vector.extract_strided_slice %77 {offsets = [0, 0, 8], sizes = [2, 16, 64], strides = [1, 1, 1]} : vector<2x18x72xf32> to vector<2x16x64xf32>
    %83 = arith.maximumf %81, %82 : vector<2x16x64xf32>
    %84 = vector.extract_strided_slice %77 {offsets = [0, 1, 0], sizes = [2, 16, 64], strides = [1, 1, 1]} : vector<2x18x72xf32> to vector<2x16x64xf32>
    %85 = arith.maximumf %83, %84 : vector<2x16x64xf32>
    %86 = vector.extract_strided_slice %77 {offsets = [0, 1, 8], sizes = [2, 16, 64], strides = [1, 1, 1]} : vector<2x18x72xf32> to vector<2x16x64xf32>
    %87 = arith.maximumf %85, %86 : vector<2x16x64xf32>
    %88 = vector.extract_strided_slice %77 {offsets = [0, 2, 0], sizes = [2, 16, 64], strides = [1, 1, 1]} : vector<2x18x72xf32> to vector<2x16x64xf32>
    %89 = arith.maximumf %87, %88 : vector<2x16x64xf32>
    %90 = vector.extract_strided_slice %77 {offsets = [0, 2, 4], sizes = [2, 16, 64], strides = [1, 1, 1]} : vector<2x18x72xf32> to vector<2x16x64xf32>
    %91 = arith.maximumf %89, %90 : vector<2x16x64xf32>
    %92 = vector.extract_strided_slice %77 {offsets = [0, 2, 8], sizes = [2, 16, 64], strides = [1, 1, 1]} : vector<2x18x72xf32> to vector<2x16x64xf32>
    %93 = arith.maximumf %91, %92 : vector<2x16x64xf32>
    %94 = vector.shape_cast %93 : vector<2x16x64xf32> to vector<32x64xf32>
    %c0_45 = arith.constant 0 : index
    %c0_46 = arith.constant 0 : index
    %95 = vector.load %arg7[%c0_45, %c0_46] : memref<64x128xf32, #tpu.memory_space<vmem>>, vector<64x128xf32>
    %cst_47 = arith.constant dense<0.000000e+00> : vector<32x128xf32>
    %96 = tpu.matmul %94, %95, %cst_47 {dimension_numbers = #tpu.dot_dimension_numbers<[1], [0], [0], [1], [0, 0, 1, 1], [], []>} : vector<32x64xf32>, vector<64x128xf32>, vector<32x128xf32> -> vector<32x128xf32>
    %c0_48 = arith.constant 0 : index
    %c0_49 = arith.constant 0 : index
    %97 = vector.load %arg8[%c0_48, %c0_49] : memref<1x128xf32, #tpu.memory_space<vmem>>, vector<1x128xf32>
    %98 = vector.broadcast %97 : vector<1x128xf32> to vector<32x128xf32>
    %99 = arith.addf %96, %98 : vector<32x128xf32>
    %cst_50 = arith.constant 0.000000e+00 : f32
    %100 = vector.broadcast %cst_50 : f32 to vector<32x128xf32>
    %101 = arith.maximumf %99, %100 : vector<32x128xf32>
    %102 = vector.shape_cast %9 : vector<32x128xf32> to vector<2x16x128xf32>
    %c0_51 = arith.constant 0 : index
    %c0_52 = arith.constant 0 : index
    %c0_53 = arith.constant 0 : index
    %103 = vector.load %arg9[%c0_51, %c0_52, %c0_53] : memref<2x16x128xf32, #tpu.memory_space<vmem>>, vector<2x16x128xf32>
    tpu.vector_store %arg9[%c0_51, %c0_52, %c0_53], %102 {strides = array<i32>} : memref<2x16x128xf32, #tpu.memory_space<vmem>>, vector<2x16x128xf32>,
    %104 = vector.shape_cast %37 : vector<32x128xf32> to vector<2x16x128xf32>
    %c0_54 = arith.constant 0 : index
    %c0_55 = arith.constant 0 : index
    %c0_56 = arith.constant 0 : index
    %105 = vector.load %arg10[%c0_54, %c0_55, %c0_56] : memref<2x16x128xf32, #tpu.memory_space<vmem>>, vector<2x16x128xf32>
    tpu.vector_store %arg10[%c0_54, %c0_55, %c0_56], %104 {strides = array<i32>} : memref<2x16x128xf32, #tpu.memory_space<vmem>>, vector<2x16x128xf32>,
    %106 = vector.shape_cast %73 : vector<32x128xf32> to vector<2x16x128xf32>
    %c0_57 = arith.constant 0 : index
    %c0_58 = arith.constant 0 : index
    %c0_59 = arith.constant 0 : index
    %107 = vector.load %arg11[%c0_57, %c0_58, %c0_59] : memref<2x16x128xf32, #tpu.memory_space<vmem>>, vector<2x16x128xf32>
    tpu.vector_store %arg11[%c0_57, %c0_58, %c0_59], %106 {strides = array<i32>} : memref<2x16x128xf32, #tpu.memory_space<vmem>>, vector<2x16x128xf32>,
    %108 = vector.shape_cast %101 : vector<32x128xf32> to vector<2x16x128xf32>
    %c0_60 = arith.constant 0 : index
    %c0_61 = arith.constant 0 : index
    %c0_62 = arith.constant 0 : index
    %109 = vector.load %arg12[%c0_60, %c0_61, %c0_62] : memref<2x16x128xf32, #tpu.memory_space<vmem>>, vector<2x16x128xf32>
    tpu.vector_store %arg12[%c0_60, %c0_61, %c0_62], %108 {strides = array<i32>} : memref<2x16x128xf32, #tpu.memory_space<vmem>>, vector<2x16x128xf32>,
    return
  }
}

</mosaic_0001>

<llo_original>
// kernel: tile.33
$region0: #{tile.33}
  #allocation0 [shape = 's32[1]{0}', space=sflag, size = 0x4, scoped, tag = 'scoped memory for tile.33']
  %s0 = inlined_call_operand.vmem [shape: f32[8], index: 0, kind: input, shape index: {}]
  %s1 = inlined_call_operand.vmem [shape: f32[16,8], index: 1, kind: output, shape index: {}]
  // Predicated region
  $region2: #{tile.33} parent=0 // pred_check
    _
  $region3: #{tile.33} parent=0 // pred_check_branch
    %3 = sbr.rel (0) target = $region5
  $region4: #{tile.33} parent=0 // pred_region
    _
  $region5: #{tile.33} parent=0 // pred_fallthru
    _
  %v4 = vld [vmem:[%s0] ss:$0 sm:$0xff]
  %5 = vst [vmem:[%s1] sm:$0xff] %v4
  %s6 = scalar_lea.vmem %s1, 8
  %7 = vst [vmem:[%s6] sm:$0xff] %v4

// kernel: tile.34
$region0: #{tile.34}
  %s0 = inlined_call_operand.vmem [shape: f32[16,8], index: 0, kind: input, shape index: {}]
  %s1 = inlined_call_operand.vmem [shape: f32[1,128], index: 1, kind: output, shape index: {}]
  $region1: #{tile.34} parent=0
    #allocation0 [shape = 'u8[4096]{0}', space=vmem, size = 0x1000, scoped, tag = 'scoped mem for output reshape']
    %v2 = vld [vmem:[%s0] sm:$0x1]
    %vm3 = vcmask 64512
    %4 = vst.msk [vmem:[#allocation0] sm:$0x1] %vm3, %v2
    %s5 = scalar_lea.vmem %s0, 15
    %v6 = vld [vmem:[%s5] sm:$0x1]
    %7 = vrot.lane.b32.xlu0 %v6, 120
    %v8 = vpop.permute.xlu0 %7
    %vm9 = vcmask 1048512
    %10 = vst.msk [vmem:[#allocation0] sm:$0x1] %vm9, %v8
    %s11 = scalar_lea.vmem %s0, 14
    %v12 = vld [vmem:[%s11] sm:$0x1]
    %13 = vrot.lane.b32.xlu0 %v12, 112
    %v14 = vpop.permute.xlu0 %13
    %vm15 = vcmask 982912
    %16 = vst.msk [vmem:[#allocation0] sm:$0x1] %vm15, %v14
    %s17 = scalar_lea.vmem %s0, 13
    %v18 = vld [vmem:[%s17] sm:$0x1]
    %19 = vrot.lane.b32.xlu0 %v18, 104
    %v20 = vpop.permute.xlu0 %19
    %vm21 = vcmask 917312
    %22 = vst.msk [vmem:[#allocation0] sm:$0x1] %vm21, %v20
    %s23 = scalar_lea.vmem %s0, 12
    %v24 = vld [vmem:[%s23] sm:$0x1]
    %25 = vrot.lane.b32.xlu0 %v24, 96
    %v26 = vpop.permute.xlu0 %25
    %vm27 = vcmask 851712
    %28 = vst.msk [vmem:[#allocation0] sm:$0x1] %vm27, %v26
    %s29 = scalar_lea.vmem %s0, 11
    %v30 = vld [vmem:[%s29] sm:$0x1]
    %31 = vrot.lane.b32.xlu0 %v30, 88
    %v32 = vpop.permute.xlu0 %31
    %vm33 = vcmask 786112
    %34 = vst.msk [vmem:[#allocation0] sm:$0x1] %vm33, %v32
    %s35 = scalar_lea.vmem %s0, 10
    %v36 = vld [vmem:[%s35] sm:$0x1]
    %37 = vrot.lane.b32.xlu0 %v36, 80
    %v38 = vpop.permute.xlu0 %37
    %vm39 = vcmask 720512
    %40 = vst.msk [vmem:[#allocation0] sm:$0x1] %vm39, %v38
    %s41 = scalar_lea.vmem %s0, 9
    %v42 = vld [vmem:[%s41] sm:$0x1]
    %43 = vrot.lane.b32.xlu0 %v42, 72
    %v44 = vpop.permute.xlu0 %43
    %vm45 = vcmask 654912
    %46 = vst.msk [vmem:[#allocation0] sm:$0x1] %vm45, %v44
    %s47 = scalar_lea.vmem %s0, 8
    %v48 = vld [vmem:[%s47] sm:$0x1]
    %49 = vrot.lane.b32.xlu0 %v48, 64
    %v50 = vpop.permute.xlu0 %49
    %vm51 = vcmask 589312
    %52 = vst.msk [vmem:[#allocation0] sm:$0x1] %vm51, %v50
    %s53 = scalar_lea.vmem %s0, 7
    %v54 = vld [vmem:[%s53] sm:$0x1]
    %55 = vrot.lane.b32.xlu0 %v54, 56
    %v56 = vpop.permute.xlu0 %55
    %vm57 = vcmask 523712
    %58 = vst.msk [vmem:[#allocation0] sm:$0x1] %vm57, %v56
    %s59 = scalar_lea.vmem %s0, 6
    %v60 = vld [vmem:[%s59] sm:$0x1]
    %61 = vrot.lane.b32.xlu0 %v60, 48
    %v62 = vpop.permute.xlu0 %61
    %vm63 = vcmask 458112
    %64 = vst.msk [vmem:[#allocation0] sm:$0x1] %vm63, %v62
    %s65 = scalar_lea.vmem %s0, 5
    %v66 = vld [vmem:[%s65] sm:$0x1]
    %67 = vrot.lane.b32.xlu0 %v66, 40
    %v68 = vpop.permute.xlu0 %67
    %vm69 = vcmask 392512
    %70 = vst.msk [vmem:[#allocation0] sm:$0x1] %vm69, %v68
    %s71 = scalar_lea.vmem %s0, 4
    %v72 = vld [vmem:[%s71] sm:$0x1]
    %73 = vrot.lane.b32.xlu0 %v72, 32
    %v74 = vpop.permute.xlu0 %73
    %vm75 = vcmask 326912
    %76 = vst.msk [vmem:[#allocation0] sm:$0x1] %vm75, %v74
    %s77 = scalar_lea.vmem %s0, 3
    %v78 = vld [vmem:[%s77] sm:$0x1]
    %79 = vrot.lane.b32.xlu0 %v78, 24
    %v80 = vpop.permute.xlu0 %79
    %vm81 = vcmask 261312
    %82 = vst.msk [vmem:[#allocation0] sm:$0x1] %vm81, %v80
    %s83 = scalar_lea.vmem %s0, 2
    %v84 = vld [vmem:[%s83] sm:$0x1]
    %85 = vrot.lane.b32.xlu0 %v84, 16
    %v86 = vpop.permute.xlu0 %85
    %vm87 = vcmask 195712
    %88 = vst.msk [vmem:[#allocation0] sm:$0x1] %vm87, %v86
    %s89 = scalar_lea.vmem %s0, 1
    %v90 = vld [vmem:[%s89] sm:$0x1]
    %91 = vrot.lane.b32.xlu0 %v90, 8
    %v92 = vpop.permute.xlu0 %91
    %vm93 = vcmask 130112
    %94 = vst.msk [vmem:[#allocation0] sm:$0x1] %vm93, %v92
    %s96 = sshllo.u32 0, 1
    %v98 = vld [vmem:[#allocation0] sm:%s96]
    %s99 = sshllo.u32 0, 1
    %100 = vst [vmem:[%s1] sm:%s99] %v98

// kernel: tile.38
$region0: #{tile.38}
  #allocation0 [shape = 's32[1]{0}', space=sflag, size = 0x4, scoped, tag = 'scoped memory for tile.38']
  %s0 = inlined_call_operand.vmem [shape: f32[4], index: 0, kind: input, shape index: {}]
  %s1 = inlined_call_operand.vmem [shape: f32[16,4], index: 1, kind: output, shape index: {}]
  // Predicated region
  $region2: #{tile.38} parent=0 // pred_check
    _
  $region3: #{tile.38} parent=0 // pred_check_branch
    %3 = sbr.rel (0) target = $region5
  $region4: #{tile.38} parent=0 // pred_region
    _
  $region5: #{tile.38} parent=0 // pred_fallthru
    _
  %v4 = vld [vmem:[%s0] ss:$0 sm:$0xff]
  %5 = vst [vmem:[%s1] sm:$0xff] %v4
  %s6 = scalar_lea.vmem %s1, 8
  %7 = vst [vmem:[%s6] sm:$0xff] %v4

// kernel: tile.39
$region0: #{tile.39}
  %s0 = inlined_call_operand.vmem [shape: f32[16,4], index: 0, kind: input, shape index: {}]
  %s1 = inlined_call_operand.vmem [shape: f32[1,64], index: 1, kind: output, shape index: {}]
  $region1: #{tile.39} parent=0
    #allocation0 [shape = 'u8[4096]{0}', space=vmem, size = 0x1000, scoped, tag = 'scoped mem for output reshape']
    %v2 = vld [vmem:[%s0] sm:$0x1]
    %vm3 = vcmask 31744
    %4 = vst.msk [vmem:[#allocation0] sm:$0x1] %vm3, %v2
    %s5 = scalar_lea.vmem %s0, 15
    %v6 = vld [vmem:[%s5] sm:$0x1]
    %7 = vrot.lane.b32.xlu0 %v6, 60
    %v8 = vpop.permute.xlu0 %7
    %vm9 = vcmask 523744
    %10 = vst.msk [vmem:[#allocation0] sm:$0x1] %vm9, %v8
    %s11 = scalar_lea.vmem %s0, 14
    %v12 = vld [vmem:[%s11] sm:$0x1]
    %13 = vrot.lane.b32.xlu0 %v12, 56
    %v14 = vpop.permute.xlu0 %13
    %vm15 = vcmask 490944
    %16 = vst.msk [vmem:[#allocation0] sm:$0x1] %vm15, %v14
    %s17 = scalar_lea.vmem %s0, 13
    %v18 = vld [vmem:[%s17] sm:$0x1]
    %19 = vrot.lane.b32.xlu0 %v18, 52
    %v20 = vpop.permute.xlu0 %19
    %vm21 = vcmask 458144
    %22 = vst.msk [vmem:[#allocation0] sm:$0x1] %vm21, %v20
    %s23 = scalar_lea.vmem %s0, 12
    %v24 = vld [vmem:[%s23] sm:$0x1]
    %25 = vrot.lane.b32.xlu0 %v24, 48
    %v26 = vpop.permute.xlu0 %25
    %vm27 = vcmask 425344
    %28 = vst.msk [vmem:[#allocation0] sm:$0x1] %vm27, %v26
    %s29 = scalar_lea.vmem %s0, 11
    %v30 = vld [vmem:[%s29] sm:$0x1]
    %31 = vrot.lane.b32.xlu0 %v30, 44
    %v32 = vpop.permute.xlu0 %31
    %vm33 = vcmask 392544
    %34 = vst.msk [vmem:[#allocation0] sm:$0x1] %vm33, %v32
    %s35 = scalar_lea.vmem %s0, 10
    %v36 = vld [vmem:[%s35] sm:$0x1]
    %37 = vrot.lane.b32.xlu0 %v36, 40
    %v38 = vpop.permute.xlu0 %37
    %vm39 = vcmask 359744
    %40 = vst.msk [vmem:[#allocation0] sm:$0x1] %vm39, %v38
    %s41 = scalar_lea.vmem %s0, 9
    %v42 = vld [vmem:[%s41] sm:$0x1]
    %43 = vrot.lane.b32.xlu0 %v42, 36
    %v44 = vpop.permute.xlu0 %43
    %vm45 = vcmask 326944
    %46 = vst.msk [vmem:[#allocation0] sm:$0x1] %vm45, %v44
    %s47 = scalar_lea.vmem %s0, 8
    %v48 = vld [vmem:[%s47] sm:$0x1]
    %49 = vrot.lane.b32.xlu0 %v48, 32
    %v50 = vpop.permute.xlu0 %49
    %vm51 = vcmask 294144
    %52 = vst.msk [vmem:[#allocation0] sm:$0x1] %vm51, %v50
    %s53 = scalar_lea.vmem %s0, 7
    %v54 = vld [vmem:[%s53] sm:$0x1]
    %55 = vrot.lane.b32.xlu0 %v54, 28
    %v56 = vpop.permute.xlu0 %55
    %vm57 = vcmask 261344
    %58 = vst.msk [vmem:[#allocation0] sm:$0x1] %vm57, %v56
    %s59 = scalar_lea.vmem %s0, 6
    %v60 = vld [vmem:[%s59] sm:$0x1]
    %61 = vrot.lane.b32.xlu0 %v60, 24
    %v62 = vpop.permute.xlu0 %61
    %vm63 = vcmask 228544
    %64 = vst.msk [vmem:[#allocation0] sm:$0x1] %vm63, %v62
    %s65 = scalar_lea.vmem %s0, 5
    %v66 = vld [vmem:[%s65] sm:$0x1]
    %67 = vrot.lane.b32.xlu0 %v66, 20
    %v68 = vpop.permute.xlu0 %67
    %vm69 = vcmask 195744
    %70 = vst.msk [vmem:[#allocation0] sm:$0x1] %vm69, %v68
    %s71 = scalar_lea.vmem %s0, 4
    %v72 = vld [vmem:[%s71] sm:$0x1]
    %73 = vrot.lane.b32.xlu0 %v72, 16
    %v74 = vpop.permute.xlu0 %73
    %vm75 = vcmask 162944
    %76 = vst.msk [vmem:[#allocation0] sm:$0x1] %vm75, %v74
    %s77 = scalar_lea.vmem %s0, 3
    %v78 = vld [vmem:[%s77] sm:$0x1]
    %79 = vrot.lane.b32.xlu0 %v78, 12
    %v80 = vpop.permute.xlu0 %79
    %vm81 = vcmask 130144
    %82 = vst.msk [vmem:[#allocation0] sm:$0x1] %vm81, %v80
    %s83 = scalar_lea.vmem %s0, 2
    %v84 = vld [vmem:[%s83] sm:$0x1]
    %85 = vrot.lane.b32.xlu0 %v84, 8
    %v86 = vpop.permute.xlu0 %85
    %vm87 = vcmask 97344
    %88 = vst.msk [vmem:[#allocation0] sm:$0x1] %vm87, %v86
    %s89 = scalar_lea.vmem %s0, 1
    %v90 = vld [vmem:[%s89] sm:$0x1]
    %91 = vrot.lane.b32.xlu0 %v90, 4
    %v92 = vpop.permute.xlu0 %91
    %vm93 = vcmask 64544
    %94 = vst.msk [vmem:[#allocation0] sm:$0x1] %vm93, %v92
    %s96 = sshllo.u32 0, 1
    %v98 = vld [vmem:[#allocation0] sm:%s96]
    %s99 = sshllo.u32 0, 1
    %100 = vst [vmem:[%s1] sm:%s99] %v98

// kernel: inception_block.1
$region0: #{inception_block.1}
  #allocation0 [shape = 'u32[]', space=smem, size = 0x4, offset = 0x4, fixed_abs, tag = 'smem constant byte address 0x4 - core index']
  #allocation1 [shape = 'u32[144,128]{1,0:T(1,128)}', space=vmem, size = 0x12000, scoped, tag = 'internal scratch']
  %s0 = inlined_call_operand.vmem [shape: f32[2,16,64], index: 0, kind: input, shape index: {}]
  %s1 = inlined_call_operand.vmem [shape: f32[64,256], index: 1, kind: input, shape index: {}]
  %s2 = inlined_call_operand.vmem [shape: f32[1,256], index: 2, kind: input, shape index: {}]
  %s3 = inlined_call_operand.vmem [shape: f32[3,64,128], index: 3, kind: input, shape index: {}]
  %s4 = inlined_call_operand.vmem [shape: f32[1,128], index: 4, kind: input, shape index: {}]
  %s5 = inlined_call_operand.vmem [shape: f32[5,64,128], index: 5, kind: input, shape index: {}]
  %s6 = inlined_call_operand.vmem [shape: f32[1,128], index: 6, kind: input, shape index: {}]
  %s7 = inlined_call_operand.vmem [shape: f32[64,128], index: 7, kind: input, shape index: {}]
  %s8 = inlined_call_operand.vmem [shape: f32[1,128], index: 8, kind: input, shape index: {}]
  %s9 = inlined_call_operand.vmem [shape: f32[2,16,128], index: 9, kind: output, shape index: {0}]
  %s10 = inlined_call_operand.vmem [shape: f32[2,16,128], index: 10, kind: output, shape index: {1}]
  %s11 = inlined_call_operand.vmem [shape: f32[2,16,128], index: 11, kind: output, shape index: {2}]
  %s12 = inlined_call_operand.vmem [shape: f32[2,16,128], index: 12, kind: output, shape index: {3}]
  %13 = xla_tuple %s9, %s10, %s11, %s12
  %s14 = sld [smem:[#allocation0]]
  $region70: #{inception_block.1} parent=0
    _
  %s16 = ssub.s32 1, %s14
  %s17 = scalar_select 0, %s16, %s14
  // Predicated region
  $region2: #{inception_block.1} parent=0 // pred_check
    _
  $region3: #{inception_block.1} parent=0 // pred_check_branch
    %19 = sbr.rel (0) target = $region5
  $region4: #{inception_block.1} parent=0 // pred_region
    _
  $region5: #{inception_block.1} parent=0 // pred_fallthru
    _
  // Predicated region
  $region6: #{inception_block.1} parent=0 // pred_check
    _
  $region7: #{inception_block.1} parent=0 // pred_check_branch
    %21 = sbr.rel (0) target = $region9
  $region8: #{inception_block.1} parent=0 // pred_region
    _
  $region9: #{inception_block.1} parent=0 // pred_fallthru
    _
  // Predicated region
  $region10: #{inception_block.1} parent=0 // pred_check
    _
  $region11: #{inception_block.1} parent=0 // pred_check_branch
    %23 = sbr.rel (0) target = $region13
  $region12: #{inception_block.1} parent=0 // pred_region
    _
  $region13: #{inception_block.1} parent=0 // pred_fallthru
    _
  // Predicated region
  $region14: #{inception_block.1} parent=0 // pred_check
    _
  $region15: #{inception_block.1} parent=0 // pred_check_branch
    %25 = sbr.rel (0) target = $region17
  $region16: #{inception_block.1} parent=0 // pred_region
    _
  $region17: #{inception_block.1} parent=0 // pred_fallthru
    _
  // Predicated region
  $region18: #{inception_block.1} parent=0 // pred_check
    _
  $region19: #{inception_block.1} parent=0 // pred_check_branch
    %27 = sbr.rel (0) target = $region21
  $region20: #{inception_block.1} parent=0 // pred_region
    _
  $region21: #{inception_block.1} parent=0 // pred_fallthru
    _
  // Predicated region
  $region22: #{inception_block.1} parent=0 // pred_check
    _
  $region23: #{inception_block.1} parent=0 // pred_check_branch
    %29 = sbr.rel (0) target = $region25
  $region24: #{inception_block.1} parent=0 // pred_region
    _
  $region25: #{inception_block.1} parent=0 // pred_fallthru
    _
  // Predicated region
  $region26: #{inception_block.1} parent=0 // pred_check
    _
  $region27: #{inception_block.1} parent=0 // pred_check_branch
    %31 = sbr.rel (0) target = $region29
  $region28: #{inception_block.1} parent=0 // pred_region
    _
  $region29: #{inception_block.1} parent=0 // pred_fallthru
    _
  // Predicated region
  $region30: #{inception_block.1} parent=0 // pred_check
    _
  $region31: #{inception_block.1} parent=0 // pred_check_branch
    %33 = sbr.rel (0) target = $region33
  $region32: #{inception_block.1} parent=0 // pred_region
    _
  $region33: #{inception_block.1} parent=0 // pred_fallthru
    _
  // Predicated region
  $region34: #{inception_block.1} parent=0 // pred_check
    _
  $region35: #{inception_block.1} parent=0 // pred_check_branch
    %35 = sbr.rel (0) target = $region37
  $region36: #{inception_block.1} parent=0 // pred_region
    _
  $region37: #{inception_block.1} parent=0 // pred_fallthru
    _
  %v36 = vld [vmem:[%s0] sm:$0xff]
  %v37 = vld [vmem:[%s0 + $0x8] sm:$0xff]
  %v38 = vld [vmem:[%s0 + $0x10] sm:$0xff]
  %v39 = vld [vmem:[%s0 + $0x18] sm:$0xff]
  %v40 = vld [vmem:[%s1] sm:$0xff]
  %v41 = vld [vmem:[%s1 + $0x8] sm:$0xff]
  %v42 = vld [vmem:[%s1 + $0x10] sm:$0xff]
  %v43 = vld [vmem:[%s1 + $0x18] sm:$0xff]
  %v44 = vld [vmem:[%s1 + $0x20] sm:$0xff]
  %v45 = vld [vmem:[%s1 + $0x28] sm:$0xff]
  %v46 = vld [vmem:[%s1 + $0x30] sm:$0xff]
  %v47 = vld [vmem:[%s1 + $0x38] sm:$0xff]
  %v48 = vld [vmem:[%s1 + $0x40] sm:$0xff]
  %v49 = vld [vmem:[%s1 + $0x48] sm:$0xff]
  %v50 = vld [vmem:[%s1 + $0x50] sm:$0xff]
  %v51 = vld [vmem:[%s1 + $0x58] sm:$0xff]
  %v52 = vld [vmem:[%s1 + $0x60] sm:$0xff]
  %v53 = vld [vmem:[%s1 + $0x68] sm:$0xff]
  %v54 = vld [vmem:[%s1 + $0x70] sm:$0xff]
  %v55 = vld [vmem:[%s1 + $0x78] sm:$0xff]
  %v56 = vld [vmem:[%s2] sm:$0x3]
  %v58 = vlaneseq
  %v59 = vshrl.u32 %v58, 7
  %v60 = vsub.s32 0, %v59
  %v61 = vrot.slane %v56, %v60
  %v62 = vlaneseq
  %v63 = vshrl.u32 %v62, 7
  %v64 = vsub.s32 1, %v63
  %v65 = vrot.slane %v56, %v64
  %vm68 = vcmask 523264
  %v70 = vsel %vm68, %v36, 0
  %v73 = vsel %vm68, %v37, 0
  %v76 = vsel %vm68, %v38, 0
  %v79 = vsel %vm68, %v39, 0
  %81 = vmatprep.subr.mxu0 %v41
  %82 = vmatpush1.msra.mxu0 %v40
  %83 = vmatprep.subr.mxu0 %v43
  %84 = vmatpush1.msra.mxu0 %v42
  %85 = vmatprep.subr.mxu0 %v45
  %86 = vmatpush1.msra.mxu0 %v44
  %87 = vmatprep.subr.mxu0 %v47
  %88 = vmatpush1.msra.mxu0 %v46
  %89 = vmatprep.subr.mxu0 %v49
  %90 = vmatpush1.msra.mxu0 %v48
  %91 = vmatprep.subr.mxu0 %v51
  %92 = vmatpush1.msra.mxu0 %v50
  %93 = vmatprep.subr.mxu0 %v53
  %94 = vmatpush1.msra.mxu0 %v52
  %95 = vmatprep.subr.mxu0 %v55
  %96 = vmatpush1.msra.mxu0 %v54
  %97 = vmatprep.subr.mxu0 0.0
  %98 = vmatpush1.msra.mxu0 0.0
  %99 = vmatprep.subr.mxu0 0.0
  %100 = vmatpush1.msra.mxu0 0.0
  %101 = vmatprep.subr.mxu0 0.0
  %102 = vmatpush1.msra.mxu0 0.0
  %103 = vmatprep.subr.mxu0 0.0
  %104 = vmatpush1.msra.mxu0 0.0
  %105 = vmatprep.subr.mxu0 0.0
  %106 = vmatpush1.msra.mxu0 0.0
  %107 = vmatprep.subr.mxu0 0.0
  %108 = vmatpush1.msra.mxu0 0.0
  %109 = vmatprep.subr.mxu0 0.0
  %110 = vmatpush1.msra.mxu0 0.0
  %111 = vmatprep.subr.mxu0 0.0
  %112 = vmatpush1.msra.mxu0 0.0
  %113 = vmatprep.subr.mxu0 0.0
  %114 = vmatpush1.msra.mxu0 0.0
  %115 = vmatprep.subr.mxu0 0.0
  %116 = vmatpush1.msra.mxu0 0.0
  %117 = vmatprep.subr.mxu0 0.0
  %118 = vmatpush1.msra.mxu0 0.0
  %119 = vmatprep.subr.mxu0 0.0
  %120 = vmatpush1.msra.mxu0 0.0
  %121 = vmatprep.subr.mxu0 0.0
  %122 = vmatpush1.msra.mxu0 0.0
  %123 = vmatprep.subr.mxu0 0.0
  %124 = vmatpush1.msra.mxu0 0.0
  %125 = vmatprep.subr.mxu0 0.0
  %126 = vmatpush1.msra.mxu0 0.0
  %127 = vmatprep.subr.mxu0 0.0
  %128 = vmatpush1.msra.mxu0 0.0
  %129 = vmatprep.subr.mxu0 0.0
  %130 = vmatpush1.msra.mxu0 0.0
  %131 = vmatprep.subr.mxu0 0.0
  %132 = vmatpush1.msra.mxu0 0.0
  %133 = vmatprep.subr.mxu0 0.0
  %134 = vmatpush1.msra.mxu0 0.0
  %135 = vmatprep.subr.mxu0 0.0
  %136 = vmatpush1.msra.mxu0 0.0
  %137 = vmatprep.subr.mxu0 0.0
  %138 = vmatpush1.msra.mxu0 0.0
  %139 = vmatprep.subr.mxu0 0.0
  %140 = vmatpush1.msra.mxu0 0.0
  %141 = vmatprep.subr.mxu0 0.0
  %142 = vmatpush1.msra.mxu0 0.0
  %143 = vmatprep.subr.mxu0 0.0
  %144 = vmatpush1.msra.mxu0 0.0
  %145 = vmatprep.mubr.f32.mxu0 0.0
  %146 = vmatmul.mubr.f32.gmra.mrb[0].mxu0 %v70
  %v147 = vpop.f32.mrb[0].mxu0
  %v148 = vadd.f32 %v61, %v147
  %v149 = vpop.f32.mrb[0].mxu0
  %v150 = vadd.f32 %v65, %v149
  %151 = vmatprep.mubr.f32.mxu0 0.0
  %152 = vmatmul.mubr.f32.gmra.mrb[0].mxu0 %v73
  %v153 = vpop.f32.mrb[0].mxu0
  %v154 = vadd.f32 %v61, %v153
  %v155 = vpop.f32.mrb[0].mxu0
  %v156 = vadd.f32 %v65, %v155
  %157 = vmatprep.mubr.f32.mxu0 0.0
  %158 = vmatmul.mubr.f32.gmra.mrb[0].mxu0 %v76
  %v159 = vpop.f32.mrb[0].mxu0
  %v160 = vadd.f32 %v61, %v159
  %v161 = vpop.f32.mrb[0].mxu0
  %v162 = vadd.f32 %v65, %v161
  %163 = vmatprep.mubr.f32.mxu0 0.0
  %164 = vmatmul.mubr.f32.gmra.mrb[0].mxu0 %v79
  %v165 = vpop.f32.mrb[0].mxu0
  %v166 = vadd.f32 %v61, %v165
  %v167 = vpop.f32.mrb[0].mxu0
  %v168 = vadd.f32 %v65, %v167
  %169 = vdwg.mxu0
  %v170 = vmax.f32 %v148, 0.0
  %v171 = vmax.f32 %v150, 0.0
  %v172 = vmax.f32 %v154, 0.0
  %v173 = vmax.f32 %v156, 0.0
  %v174 = vmax.f32 %v160, 0.0
  %v175 = vmax.f32 %v162, 0.0
  %v176 = vmax.f32 %v166, 0.0
  %v177 = vmax.f32 %v168, 0.0
  %vm182 = vcmask 1040384
  %v183 = vrot.slane %v171, 7
  %v184 = vrot.slane %v173, 7
  %v185 = vsel %vm182, %v183, %v184
  %v186 = vrot.slane %v175, 7
  %v187 = vrot.slane %v177, 7
  %v188 = vsel %vm182, %v186, %v187
  %v193 = vsel %vm182, 0.0, %v183
  %v194 = vsel %vm182, 0.0, %v186
  %v195 = vsel %vm182, %v184, 0.0
  %v196 = vsel %vm182, %v187, 0.0
  %v197 = vld [vmem:[%s4] sm:$0x1]
  %v198 = vld [vmem:[%s3] sm:$0xff]
  %v199 = vld [vmem:[%s3 + $0x8] sm:$0xff]
  %v200 = vld [vmem:[%s3 + $0x10] sm:$0xff]
  %v201 = vld [vmem:[%s3 + $0x18] sm:$0xff]
  %v202 = vld [vmem:[%s3 + $0x20] sm:$0xff]
  %v203 = vld [vmem:[%s3 + $0x28] sm:$0xff]
  %v204 = vld [vmem:[%s3 + $0x30] sm:$0xff]
  %v205 = vld [vmem:[%s3 + $0x38] sm:$0xff]
  %v207 = vsel %vm68, %v193, 0
  %v209 = vsel %vm68, %v185, 0
  %v212 = vsel %vm68, %v194, 0
  %v214 = vsel %vm68, %v188, 0
  %216 = vmatprep.subr.mxu0 0.0
  %217 = vmatpush1.msra.mxu0 %v198
  %218 = vmatprep.subr.mxu0 0.0
  %219 = vmatpush1.msra.mxu0 %v199
  %220 = vmatprep.subr.mxu0 0.0
  %221 = vmatpush1.msra.mxu0 %v200
  %222 = vmatprep.subr.mxu0 0.0
  %223 = vmatpush1.msra.mxu0 %v201
  %224 = vmatprep.subr.mxu0 0.0
  %225 = vmatpush1.msra.mxu0 %v202
  %226 = vmatprep.subr.mxu0 0.0
  %227 = vmatpush1.msra.mxu0 %v203
  %228 = vmatprep.subr.mxu0 0.0
  %229 = vmatpush1.msra.mxu0 %v204
  %230 = vmatprep.subr.mxu0 0.0
  %231 = vmatpush1.msra.mxu0 %v205
  %232 = vmatprep.subr.mxu0 0.0
  %233 = vmatpush1.msra.mxu0 0.0
  %234 = vmatprep.subr.mxu0 0.0
  %235 = vmatpush1.msra.mxu0 0.0
  %236 = vmatprep.subr.mxu0 0.0
  %237 = vmatpush1.msra.mxu0 0.0
  %238 = vmatprep.subr.mxu0 0.0
  %239 = vmatpush1.msra.mxu0 0.0
  %240 = vmatprep.subr.mxu0 0.0
  %241 = vmatpush1.msra.mxu0 0.0
  %242 = vmatprep.subr.mxu0 0.0
  %243 = vmatpush1.msra.mxu0 0.0
  %244 = vmatprep.subr.mxu0 0.0
  %245 = vmatpush1.msra.mxu0 0.0
  %246 = vmatprep.subr.mxu0 0.0
  %247 = vmatpush1.msra.mxu0 0.0
  %248 = vmatprep.subr.mxu0 0.0
  %249 = vmatpush1.msra.mxu0 0.0
  %250 = vmatprep.subr.mxu0 0.0
  %251 = vmatpush1.msra.mxu0 0.0
  %252 = vmatprep.subr.mxu0 0.0
  %253 = vmatpush1.msra.mxu0 0.0
  %254 = vmatprep.subr.mxu0 0.0
  %255 = vmatpush1.msra.mxu0 0.0
  %256 = vmatprep.subr.mxu0 0.0
  %257 = vmatpush1.msra.mxu0 0.0
  %258 = vmatprep.subr.mxu0 0.0
  %259 = vmatpush1.msra.mxu0 0.0
  %260 = vmatprep.subr.mxu0 0.0
  %261 = vmatpush1.msra.mxu0 0.0
  %262 = vmatprep.subr.mxu0 0.0
  %263 = vmatpush1.msra.mxu0 0.0
  %264 = vmatprep.subr.mxu0 0.0
  %265 = vmatpush1.msra.mxu0 0.0
  %266 = vmatprep.subr.mxu0 0.0
  %267 = vmatpush1.msra.mxu0 0.0
  %268 = vmatprep.subr.mxu0 0.0
  %269 = vmatpush1.msra.mxu0 0.0
  %270 = vmatprep.subr.mxu0 0.0
  %271 = vmatpush1.msra.mxu0 0.0
  %272 = vmatprep.subr.mxu0 0.0
  %273 = vmatpush1.msra.mxu0 0.0
  %274 = vmatprep.subr.mxu0 0.0
  %275 = vmatpush1.msra.mxu0 0.0
  %276 = vmatprep.subr.mxu0 0.0
  %277 = vmatpush1.msra.mxu0 0.0
  %278 = vmatprep.subr.mxu0 0.0
  %279 = vmatpush1.msra.mxu0 0.0
  %280 = vmatprep.mubr.f32.mxu0 0.0
  %281 = vmatmul.mubr.f32.gmra.mrb[0].mxu0 %v207
  %v282 = vpop.f32.mrb[0].mxu0
  %v283 = vadd.f32 0.0, %v282
  %v284 = vpop.f32.mrb[0].mxu0
  %285 = vmatprep.mubr.f32.mxu0 0.0
  %286 = vmatmul.mubr.f32.gmra.mrb[0].mxu0 %v209
  %v287 = vpop.f32.mrb[0].mxu0
  %v288 = vadd.f32 0.0, %v287
  %v289 = vpop.f32.mrb[0].mxu0
  %290 = vmatprep.mubr.f32.mxu0 0.0
  %291 = vmatmul.mubr.f32.gmra.mrb[0].mxu0 %v212
  %v292 = vpop.f32.mrb[0].mxu0
  %v293 = vadd.f32 0.0, %v292
  %v294 = vpop.f32.mrb[0].mxu0
  %295 = vmatprep.mubr.f32.mxu0 0.0
  %296 = vmatmul.mubr.f32.gmra.mrb[0].mxu0 %v214
  %v297 = vpop.f32.mrb[0].mxu0
  %v298 = vadd.f32 0.0, %v297
  %v299 = vpop.f32.mrb[0].mxu0
  %300 = vdwg.mxu0
  %v302 = vlaneseq
  %v303 = vshrl.u32 %v302, 7
  %v304 = vsub.s32 0, %v303
  %v305 = vrot.slane %v197, %v304
  %v307 = vadd.f32 %v305, %v283
  %v308 = vadd.f32 %v305, %v288
  %v309 = vadd.f32 %v305, %v293
  %v310 = vadd.f32 %v305, %v298
  %vm313 = vcmask 1046528
  %v314 = vrot.slane %v193, 1
  %v315 = vrot.slane %v185, 1
  %v316 = vsel %vm313, %v314, %v315
  %v317 = vrot.slane %v195, 1
  %v318 = vsel %vm313, %v315, %v317
  %v319 = vrot.slane %v194, 1
  %v320 = vrot.slane %v188, 1
  %v321 = vsel %vm313, %v319, %v320
  %v322 = vrot.slane %v196, 1
  %v323 = vsel %vm313, %v320, %v322
  %s324 = scalar_lea.vmem %s3, 64
  %v325 = vld [vmem:[%s324] sm:$0xff]
  %v326 = vld [vmem:[%s324 + $0x8] sm:$0xff]
  %v327 = vld [vmem:[%s324 + $0x10] sm:$0xff]
  %v328 = vld [vmem:[%s324 + $0x18] sm:$0xff]
  %v329 = vld [vmem:[%s324 + $0x20] sm:$0xff]
  %v330 = vld [vmem:[%s324 + $0x28] sm:$0xff]
  %v331 = vld [vmem:[%s324 + $0x30] sm:$0xff]
  %v332 = vld [vmem:[%s324 + $0x38] sm:$0xff]
  %v333 = vsel %vm68, %v316, 0
  %v335 = vsel %vm68, %v318, 0
  %v337 = vsel %vm68, %v321, 0
  %v339 = vsel %vm68, %v323, 0
  %341 = vmatprep.subr.mxu0 0.0
  %342 = vmatpush1.msra.mxu0 %v325
  %343 = vmatprep.subr.mxu0 0.0
  %344 = vmatpush1.msra.mxu0 %v326
  %345 = vmatprep.subr.mxu0 0.0
  %346 = vmatpush1.msra.mxu0 %v327
  %347 = vmatprep.subr.mxu0 0.0
  %348 = vmatpush1.msra.mxu0 %v328
  %349 = vmatprep.subr.mxu0 0.0
  %350 = vmatpush1.msra.mxu0 %v329
  %351 = vmatprep.subr.mxu0 0.0
  %352 = vmatpush1.msra.mxu0 %v330
  %353 = vmatprep.subr.mxu0 0.0
  %354 = vmatpush1.msra.mxu0 %v331
  %355 = vmatprep.subr.mxu0 0.0
  %356 = vmatpush1.msra.mxu0 %v332
  %357 = vmatprep.subr.mxu0 0.0
  %358 = vmatpush1.msra.mxu0 0.0
  %359 = vmatprep.subr.mxu0 0.0
  %360 = vmatpush1.msra.mxu0 0.0
  %361 = vmatprep.subr.mxu0 0.0
  %362 = vmatpush1.msra.mxu0 0.0
  %363 = vmatprep.subr.mxu0 0.0
  %364 = vmatpush1.msra.mxu0 0.0
  %365 = vmatprep.subr.mxu0 0.0
  %366 = vmatpush1.msra.mxu0 0.0
  %367 = vmatprep.subr.mxu0 0.0
  %368 = vmatpush1.msra.mxu0 0.0
  %369 = vmatprep.subr.mxu0 0.0
  %370 = vmatpush1.msra.mxu0 0.0
  %371 = vmatprep.subr.mxu0 0.0
  %372 = vmatpush1.msra.mxu0 0.0
  %373 = vmatprep.subr.mxu0 0.0
  %374 = vmatpush1.msra.mxu0 0.0
  %375 = vmatprep.subr.mxu0 0.0
  %376 = vmatpush1.msra.mxu0 0.0
  %377 = vmatprep.subr.mxu0 0.0
  %378 = vmatpush1.msra.mxu0 0.0
  %379 = vmatprep.subr.mxu0 0.0
  %380 = vmatpush1.msra.mxu0 0.0
  %381 = vmatprep.subr.mxu0 0.0
  %382 = vmatpush1.msra.mxu0 0.0
  %383 = vmatprep.subr.mxu0 0.0
  %384 = vmatpush1.msra.mxu0 0.0
  %385 = vmatprep.subr.mxu0 0.0
  %386 = vmatpush1.msra.mxu0 0.0
  %387 = vmatprep.subr.mxu0 0.0
  %388 = vmatpush1.msra.mxu0 0.0
  %389 = vmatprep.subr.mxu0 0.0
  %390 = vmatpush1.msra.mxu0 0.0
  %391 = vmatprep.subr.mxu0 0.0
  %392 = vmatpush1.msra.mxu0 0.0
  %393 = vmatprep.subr.mxu0 0.0
  %394 = vmatpush1.msra.mxu0 0.0
  %395 = vmatprep.subr.mxu0 0.0
  %396 = vmatpush1.msra.mxu0 0.0
  %397 = vmatprep.subr.mxu0 0.0
  %398 = vmatpush1.msra.mxu0 0.0
  %399 = vmatprep.subr.mxu0 0.0
  %400 = vmatpush1.msra.mxu0 0.0
  %401 = vmatprep.subr.mxu0 0.0
  %402 = vmatpush1.msra.mxu0 0.0
  %403 = vmatprep.subr.mxu0 0.0
  %404 = vmatpush1.msra.mxu0 0.0
  %405 = vmatprep.mubr.f32.mxu0 0.0
  %406 = vmatmul.mubr.f32.gmra.mrb[0].mxu0 %v333
  %v407 = vpop.f32.mrb[0].mxu0
  %v408 = vadd.f32 0.0, %v407
  %v409 = vpop.f32.mrb[0].mxu0
  %410 = vmatprep.mubr.f32.mxu0 0.0
  %411 = vmatmul.mubr.f32.gmra.mrb[0].mxu0 %v335
  %v412 = vpop.f32.mrb[0].mxu0
  %v413 = vadd.f32 0.0, %v412
  %v414 = vpop.f32.mrb[0].mxu0
  %415 = vmatprep.mubr.f32.mxu0 0.0
  %416 = vmatmul.mubr.f32.gmra.mrb[0].mxu0 %v337
  %v417 = vpop.f32.mrb[0].mxu0
  %v418 = vadd.f32 0.0, %v417
  %v419 = vpop.f32.mrb[0].mxu0
  %420 = vmatprep.mubr.f32.mxu0 0.0
  %421 = vmatmul.mubr.f32.gmra.mrb[0].mxu0 %v339
  %v422 = vpop.f32.mrb[0].mxu0
  %v423 = vadd.f32 0.0, %v422
  %v424 = vpop.f32.mrb[0].mxu0
  %425 = vdwg.mxu0
  %v426 = vadd.f32 %v307, %v408
  %v427 = vadd.f32 %v308, %v413
  %v428 = vadd.f32 %v309, %v418
  %v429 = vadd.f32 %v310, %v423
  %vm430 = vcmask 1045504
  %v431 = vrot.slane %v193, 2
  %v432 = vrot.slane %v185, 2
  %v433 = vsel %vm430, %v431, %v432
  %v434 = vrot.slane %v195, 2
  %v435 = vsel %vm430, %v432, %v434
  %v436 = vrot.slane %v194, 2
  %v437 = vrot.slane %v188, 2
  %v438 = vsel %vm430, %v436, %v437
  %v439 = vrot.slane %v196, 2
  %v440 = vsel %vm430, %v437, %v439
  %s441 = scalar_lea.vmem %s3, 128
  %v442 = vld [vmem:[%s441] sm:$0xff]
  %v443 = vld [vmem:[%s441 + $0x8] sm:$0xff]
  %v444 = vld [vmem:[%s441 + $0x10] sm:$0xff]
  %v445 = vld [vmem:[%s441 + $0x18] sm:$0xff]
  %v446 = vld [vmem:[%s441 + $0x20] sm:$0xff]
  %v447 = vld [vmem:[%s441 + $0x28] sm:$0xff]
  %v448 = vld [vmem:[%s441 + $0x30] sm:$0xff]
  %v449 = vld [vmem:[%s441 + $0x38] sm:$0xff]
  %v450 = vsel %vm68, %v433, 0
  %v452 = vsel %vm68, %v435, 0
  %v454 = vsel %vm68, %v438, 0
  %v456 = vsel %vm68, %v440, 0
  %458 = vmatprep.subr.mxu0 0.0
  %459 = vmatpush1.msra.mxu0 %v442
  %460 = vmatprep.subr.mxu0 0.0
  %461 = vmatpush1.msra.mxu0 %v443
  %462 = vmatprep.subr.mxu0 0.0
  %463 = vmatpush1.msra.mxu0 %v444
  %464 = vmatprep.subr.mxu0 0.0
  %465 = vmatpush1.msra.mxu0 %v445
  %466 = vmatprep.subr.mxu0 0.0
  %467 = vmatpush1.msra.mxu0 %v446
  %468 = vmatprep.subr.mxu0 0.0
  %469 = vmatpush1.msra.mxu0 %v447
  %470 = vmatprep.subr.mxu0 0.0
  %471 = vmatpush1.msra.mxu0 %v448
  %472 = vmatprep.subr.mxu0 0.0
  %473 = vmatpush1.msra.mxu0 %v449
  %474 = vmatprep.subr.mxu0 0.0
  %475 = vmatpush1.msra.mxu0 0.0
  %476 = vmatprep.subr.mxu0 0.0
  %477 = vmatpush1.msra.mxu0 0.0
  %478 = vmatprep.subr.mxu0 0.0
  %479 = vmatpush1.msra.mxu0 0.0
  %480 = vmatprep.subr.mxu0 0.0
  %481 = vmatpush1.msra.mxu0 0.0
  %482 = vmatprep.subr.mxu0 0.0
  %483 = vmatpush1.msra.mxu0 0.0
  %484 = vmatprep.subr.mxu0 0.0
  %485 = vmatpush1.msra.mxu0 0.0
  %486 = vmatprep.subr.mxu0 0.0
  %487 = vmatpush1.msra.mxu0 0.0
  %488 = vmatprep.subr.mxu0 0.0
  %489 = vmatpush1.msra.mxu0 0.0
  %490 = vmatprep.subr.mxu0 0.0
  %491 = vmatpush1.msra.mxu0 0.0
  %492 = vmatprep.subr.mxu0 0.0
  %493 = vmatpush1.msra.mxu0 0.0
  %494 = vmatprep.subr.mxu0 0.0
  %495 = vmatpush1.msra.mxu0 0.0
  %496 = vmatprep.subr.mxu0 0.0
  %497 = vmatpush1.msra.mxu0 0.0
  %498 = vmatprep.subr.mxu0 0.0
  %499 = vmatpush1.msra.mxu0 0.0
  %500 = vmatprep.subr.mxu0 0.0
  %501 = vmatpush1.msra.mxu0 0.0
  %502 = vmatprep.subr.mxu0 0.0
  %503 = vmatpush1.msra.mxu0 0.0
  %504 = vmatprep.subr.mxu0 0.0
  %505 = vmatpush1.msra.mxu0 0.0
  %506 = vmatprep.subr.mxu0 0.0
  %507 = vmatpush1.msra.mxu0 0.0
  %508 = vmatprep.subr.mxu0 0.0
  %509 = vmatpush1.msra.mxu0 0.0
  %510 = vmatprep.subr.mxu0 0.0
  %511 = vmatpush1.msra.mxu0 0.0
  %512 = vmatprep.subr.mxu0 0.0
  %513 = vmatpush1.msra.mxu0 0.0
  %514 = vmatprep.subr.mxu0 0.0
  %515 = vmatpush1.msra.mxu0 0.0
  %516 = vmatprep.subr.mxu0 0.0
  %517 = vmatpush1.msra.mxu0 0.0
  %518 = vmatprep.subr.mxu0 0.0
  %519 = vmatpush1.msra.mxu0 0.0
  %520 = vmatprep.subr.mxu0 0.0
  %521 = vmatpush1.msra.mxu0 0.0
  %522 = vmatprep.mubr.f32.mxu0 0.0
  %523 = vmatmul.mubr.f32.gmra.mrb[0].mxu0 %v450
  %v524 = vpop.f32.mrb[0].mxu0
  %v525 = vadd.f32 0.0, %v524
  %v526 = vpop.f32.mrb[0].mxu0
  %527 = vmatprep.mubr.f32.mxu0 0.0
  %528 = vmatmul.mubr.f32.gmra.mrb[0].mxu0 %v452
  %v529 = vpop.f32.mrb[0].mxu0
  %v530 = vadd.f32 0.0, %v529
  %v531 = vpop.f32.mrb[0].mxu0
  %532 = vmatprep.mubr.f32.mxu0 0.0
  %533 = vmatmul.mubr.f32.gmra.mrb[0].mxu0 %v454
  %v534 = vpop.f32.mrb[0].mxu0
  %v535 = vadd.f32 0.0, %v534
  %v536 = vpop.f32.mrb[0].mxu0
  %537 = vmatprep.mubr.f32.mxu0 0.0
  %538 = vmatmul.mubr.f32.gmra.mrb[0].mxu0 %v456
  %v539 = vpop.f32.mrb[0].mxu0
  %v540 = vadd.f32 0.0, %v539
  %v541 = vpop.f32.mrb[0].mxu0
  %542 = vdwg.mxu0
  %v543 = vadd.f32 %v426, %v525
  %v544 = vadd.f32 %v427, %v530
  %v545 = vadd.f32 %v428, %v535
  %v546 = vadd.f32 %v429, %v540
  %v547 = vmax.f32 %v543, 0.0
  %v548 = vmax.f32 %v544, 0.0
  %v549 = vmax.f32 %v545, 0.0
  %v550 = vmax.f32 %v546, 0.0
  %vm551 = vcmask 1041408
  %v552 = vrot.slane %v171, 6
  %v553 = vrot.slane %v173, 6
  %v554 = vsel %vm551, %v552, %v553
  %v555 = vrot.slane %v175, 6
  %v556 = vrot.slane %v177, 6
  %v557 = vsel %vm551, %v555, %v556
  %558 = vrot.lane.b32.xlu0 %v552, 64
  %v559 = vpop.permute.xlu0 %558
  %560 = vrot.lane.b32.xlu0 %v554, 64
  %v561 = vpop.permute.xlu0 %560
  %562 = vrot.lane.b32.xlu0 %v553, 64
  %v563 = vpop.permute.xlu0 %562
  %564 = vrot.lane.b32.xlu0 %v555, 64
  %v565 = vpop.permute.xlu0 %564
  %566 = vrot.lane.b32.xlu0 %v557, 64
  %v567 = vpop.permute.xlu0 %566
  %568 = vrot.lane.b32.xlu0 %v556, 64
  %v569 = vpop.permute.xlu0 %568
  %v574 = vsel %vm551, 0.0, %v559
  %v575 = vsel %vm551, 0.0, %v565
  %v576 = vsel %vm551, %v563, 0.0
  %v577 = vsel %vm551, %v569, 0.0
  %v578 = vld [vmem:[%s6] sm:$0x1]
  %v579 = vld [vmem:[%s5] sm:$0xff]
  %v580 = vld [vmem:[%s5 + $0x8] sm:$0xff]
  %v581 = vld [vmem:[%s5 + $0x10] sm:$0xff]
  %v582 = vld [vmem:[%s5 + $0x18] sm:$0xff]
  %v583 = vld [vmem:[%s5 + $0x20] sm:$0xff]
  %v584 = vld [vmem:[%s5 + $0x28] sm:$0xff]
  %v585 = vld [vmem:[%s5 + $0x30] sm:$0xff]
  %v586 = vld [vmem:[%s5 + $0x38] sm:$0xff]
  %v588 = vsel %vm68, %v574, 0
  %v590 = vsel %vm68, %v561, 0
  %v593 = vsel %vm68, %v575, 0
  %v595 = vsel %vm68, %v567, 0
  %597 = vmatprep.subr.mxu0 0.0
  %598 = vmatpush1.msra.mxu0 %v579
  %599 = vmatprep.subr.mxu0 0.0
  %600 = vmatpush1.msra.mxu0 %v580
  %601 = vmatprep.subr.mxu0 0.0
  %602 = vmatpush1.msra.mxu0 %v581
  %603 = vmatprep.subr.mxu0 0.0
  %604 = vmatpush1.msra.mxu0 %v582
  %605 = vmatprep.subr.mxu0 0.0
  %606 = vmatpush1.msra.mxu0 %v583
  %607 = vmatprep.subr.mxu0 0.0
  %608 = vmatpush1.msra.mxu0 %v584
  %609 = vmatprep.subr.mxu0 0.0
  %610 = vmatpush1.msra.mxu0 %v585
  %611 = vmatprep.subr.mxu0 0.0
  %612 = vmatpush1.msra.mxu0 %v586
  %613 = vmatprep.subr.mxu0 0.0
  %614 = vmatpush1.msra.mxu0 0.0
  %615 = vmatprep.subr.mxu0 0.0
  %616 = vmatpush1.msra.mxu0 0.0
  %617 = vmatprep.subr.mxu0 0.0
  %618 = vmatpush1.msra.mxu0 0.0
  %619 = vmatprep.subr.mxu0 0.0
  %620 = vmatpush1.msra.mxu0 0.0
  %621 = vmatprep.subr.mxu0 0.0
  %622 = vmatpush1.msra.mxu0 0.0
  %623 = vmatprep.subr.mxu0 0.0
  %624 = vmatpush1.msra.mxu0 0.0
  %625 = vmatprep.subr.mxu0 0.0
  %626 = vmatpush1.msra.mxu0 0.0
  %627 = vmatprep.subr.mxu0 0.0
  %628 = vmatpush1.msra.mxu0 0.0
  %629 = vmatprep.subr.mxu0 0.0
  %630 = vmatpush1.msra.mxu0 0.0
  %631 = vmatprep.subr.mxu0 0.0
  %632 = vmatpush1.msra.mxu0 0.0
  %633 = vmatprep.subr.mxu0 0.0
  %634 = vmatpush1.msra.mxu0 0.0
  %635 = vmatprep.subr.mxu0 0.0
  %636 = vmatpush1.msra.mxu0 0.0
  %637 = vmatprep.subr.mxu0 0.0
  %638 = vmatpush1.msra.mxu0 0.0
  %639 = vmatprep.subr.mxu0 0.0
  %640 = vmatpush1.msra.mxu0 0.0
  %641 = vmatprep.subr.mxu0 0.0
  %642 = vmatpush1.msra.mxu0 0.0
  %643 = vmatprep.subr.mxu0 0.0
  %644 = vmatpush1.msra.mxu0 0.0
  %645 = vmatprep.subr.mxu0 0.0
  %646 = vmatpush1.msra.mxu0 0.0
  %647 = vmatprep.subr.mxu0 0.0
  %648 = vmatpush1.msra.mxu0 0.0
  %649 = vmatprep.subr.mxu0 0.0
  %650 = vmatpush1.msra.mxu0 0.0
  %651 = vmatprep.subr.mxu0 0.0
  %652 = vmatpush1.msra.mxu0 0.0
  %653 = vmatprep.subr.mxu0 0.0
  %654 = vmatpush1.msra.mxu0 0.0
  %655 = vmatprep.subr.mxu0 0.0
  %656 = vmatpush1.msra.mxu0 0.0
  %657 = vmatprep.subr.mxu0 0.0
  %658 = vmatpush1.msra.mxu0 0.0
  %659 = vmatprep.subr.mxu0 0.0
  %660 = vmatpush1.msra.mxu0 0.0
  %661 = vmatprep.mubr.f32.mxu0 0.0
  %662 = vmatmul.mubr.f32.gmra.mrb[0].mxu0 %v588
  %v663 = vpop.f32.mrb[0].mxu0
  %v664 = vadd.f32 0.0, %v663
  %v665 = vpop.f32.mrb[0].mxu0
  %666 = vmatprep.mubr.f32.mxu0 0.0
  %667 = vmatmul.mubr.f32.gmra.mrb[0].mxu0 %v590
  %v668 = vpop.f32.mrb[0].mxu0
  %v669 = vadd.f32 0.0, %v668
  %v670 = vpop.f32.mrb[0].mxu0
  %671 = vmatprep.mubr.f32.mxu0 0.0
  %672 = vmatmul.mubr.f32.gmra.mrb[0].mxu0 %v593
  %v673 = vpop.f32.mrb[0].mxu0
  %v674 = vadd.f32 0.0, %v673
  %v675 = vpop.f32.mrb[0].mxu0
  %676 = vmatprep.mubr.f32.mxu0 0.0
  %677 = vmatmul.mubr.f32.gmra.mrb[0].mxu0 %v595
  %v678 = vpop.f32.mrb[0].mxu0
  %v679 = vadd.f32 0.0, %v678
  %v680 = vpop.f32.mrb[0].mxu0
  %681 = vdwg.mxu0
  %v683 = vlaneseq
  %v684 = vshrl.u32 %v683, 7
  %v685 = vsub.s32 0, %v684
  %v686 = vrot.slane %v578, %v685
  %v688 = vadd.f32 %v686, %v664
  %v689 = vadd.f32 %v686, %v669
  %v690 = vadd.f32 %v686, %v674
  %v691 = vadd.f32 %v686, %v679
  %v694 = vrot.slane %v574, 1
  %v695 = vrot.slane %v561, 1
  %v696 = vsel %vm313, %v694, %v695
  %v697 = vrot.slane %v576, 1
  %v698 = vsel %vm313, %v695, %v697
  %v699 = vrot.slane %v575, 1
  %v700 = vrot.slane %v567, 1
  %v701 = vsel %vm313, %v699, %v700
  %v702 = vrot.slane %v577, 1
  %v703 = vsel %vm313, %v700, %v702
  %s704 = scalar_lea.vmem %s5, 64
  %v705 = vld [vmem:[%s704] sm:$0xff]
  %v706 = vld [vmem:[%s704 + $0x8] sm:$0xff]
  %v707 = vld [vmem:[%s704 + $0x10] sm:$0xff]
  %v708 = vld [vmem:[%s704 + $0x18] sm:$0xff]
  %v709 = vld [vmem:[%s704 + $0x20] sm:$0xff]
  %v710 = vld [vmem:[%s704 + $0x28] sm:$0xff]
  %v711 = vld [vmem:[%s704 + $0x30] sm:$0xff]
  %v712 = vld [vmem:[%s704 + $0x38] sm:$0xff]
  %v713 = vsel %vm68, %v696, 0
  %v715 = vsel %vm68, %v698, 0
  %v717 = vsel %vm68, %v701, 0
  %v719 = vsel %vm68, %v703, 0
  %721 = vmatprep.subr.mxu0 0.0
  %722 = vmatpush1.msra.mxu0 %v705
  %723 = vmatprep.subr.mxu0 0.0
  %724 = vmatpush1.msra.mxu0 %v706
  %725 = vmatprep.subr.mxu0 0.0
  %726 = vmatpush1.msra.mxu0 %v707
  %727 = vmatprep.subr.mxu0 0.0
  %728 = vmatpush1.msra.mxu0 %v708
  %729 = vmatprep.subr.mxu0 0.0
  %730 = vmatpush1.msra.mxu0 %v709
  %731 = vmatprep.subr.mxu0 0.0
  %732 = vmatpush1.msra.mxu0 %v710
  %733 = vmatprep.subr.mxu0 0.0
  %734 = vmatpush1.msra.mxu0 %v711
  %735 = vmatprep.subr.mxu0 0.0
  %736 = vmatpush1.msra.mxu0 %v712
  %737 = vmatprep.subr.mxu0 0.0
  %738 = vmatpush1.msra.mxu0 0.0
  %739 = vmatprep.subr.mxu0 0.0
  %740 = vmatpush1.msra.mxu0 0.0
  %741 = vmatprep.subr.mxu0 0.0
  %742 = vmatpush1.msra.mxu0 0.0
  %743 = vmatprep.subr.mxu0 0.0
  %744 = vmatpush1.msra.mxu0 0.0
  %745 = vmatprep.subr.mxu0 0.0
  %746 = vmatpush1.msra.mxu0 0.0
  %747 = vmatprep.subr.mxu0 0.0
  %748 = vmatpush1.msra.mxu0 0.0
  %749 = vmatprep.subr.mxu0 0.0
  %750 = vmatpush1.msra.mxu0 0.0
  %751 = vmatprep.subr.mxu0 0.0
  %752 = vmatpush1.msra.mxu0 0.0
  %753 = vmatprep.subr.mxu0 0.0
  %754 = vmatpush1.msra.mxu0 0.0
  %755 = vmatprep.subr.mxu0 0.0
  %756 = vmatpush1.msra.mxu0 0.0
  %757 = vmatprep.subr.mxu0 0.0
  %758 = vmatpush1.msra.mxu0 0.0
  %759 = vmatprep.subr.mxu0 0.0
  %760 = vmatpush1.msra.mxu0 0.0
  %761 = vmatprep.subr.mxu0 0.0
  %762 = vmatpush1.msra.mxu0 0.0
  %763 = vmatprep.subr.mxu0 0.0
  %764 = vmatpush1.msra.mxu0 0.0
  %765 = vmatprep.subr.mxu0 0.0
  %766 = vmatpush1.msra.mxu0 0.0
  %767 = vmatprep.subr.mxu0 0.0
  %768 = vmatpush1.msra.mxu0 0.0
  %769 = vmatprep.subr.mxu0 0.0
  %770 = vmatpush1.msra.mxu0 0.0
  %771 = vmatprep.subr.mxu0 0.0
  %772 = vmatpush1.msra.mxu0 0.0
  %773 = vmatprep.subr.mxu0 0.0
  %774 = vmatpush1.msra.mxu0 0.0
  %775 = vmatprep.subr.mxu0 0.0
  %776 = vmatpush1.msra.mxu0 0.0
  %777 = vmatprep.subr.mxu0 0.0
  %778 = vmatpush1.msra.mxu0 0.0
  %779 = vmatprep.subr.mxu0 0.0
  %780 = vmatpush1.msra.mxu0 0.0
  %781 = vmatprep.subr.mxu0 0.0
  %782 = vmatpush1.msra.mxu0 0.0
  %783 = vmatprep.subr.mxu0 0.0
  %784 = vmatpush1.msra.mxu0 0.0
  %785 = vmatprep.mubr.f32.mxu0 0.0
  %786 = vmatmul.mubr.f32.gmra.mrb[0].mxu0 %v713
  %v787 = vpop.f32.mrb[0].mxu0
  %v788 = vadd.f32 0.0, %v787
  %v789 = vpop.f32.mrb[0].mxu0
  %790 = vmatprep.mubr.f32.mxu0 0.0
  %791 = vmatmul.mubr.f32.gmra.mrb[0].mxu0 %v715
  %v792 = vpop.f32.mrb[0].mxu0
  %v793 = vadd.f32 0.0, %v792
  %v794 = vpop.f32.mrb[0].mxu0
  %795 = vmatprep.mubr.f32.mxu0 0.0
  %796 = vmatmul.mubr.f32.gmra.mrb[0].mxu0 %v717
  %v797 = vpop.f32.mrb[0].mxu0
  %v798 = vadd.f32 0.0, %v797
  %v799 = vpop.f32.mrb[0].mxu0
  %800 = vmatprep.mubr.f32.mxu0 0.0
  %801 = vmatmul.mubr.f32.gmra.mrb[0].mxu0 %v719
  %v802 = vpop.f32.mrb[0].mxu0
  %v803 = vadd.f32 0.0, %v802
  %v804 = vpop.f32.mrb[0].mxu0
  %805 = vdwg.mxu0
  %v806 = vadd.f32 %v688, %v788
  %v807 = vadd.f32 %v689, %v793
  %v808 = vadd.f32 %v690, %v798
  %v809 = vadd.f32 %v691, %v803
  %v810 = vrot.slane %v574, 2
  %v811 = vrot.slane %v561, 2
  %v812 = vsel %vm430, %v810, %v811
  %v813 = vrot.slane %v576, 2
  %v814 = vsel %vm430, %v811, %v813
  %v815 = vrot.slane %v575, 2
  %v816 = vrot.slane %v567, 2
  %v817 = vsel %vm430, %v815, %v816
  %v818 = vrot.slane %v577, 2
  %v819 = vsel %vm430, %v816, %v818
  %s820 = scalar_lea.vmem %s5, 128
  %v821 = vld [vmem:[%s820] sm:$0xff]
  %v822 = vld [vmem:[%s820 + $0x8] sm:$0xff]
  %v823 = vld [vmem:[%s820 + $0x10] sm:$0xff]
  %v824 = vld [vmem:[%s820 + $0x18] sm:$0xff]
  %v825 = vld [vmem:[%s820 + $0x20] sm:$0xff]
  %v826 = vld [vmem:[%s820 + $0x28] sm:$0xff]
  %v827 = vld [vmem:[%s820 + $0x30] sm:$0xff]
  %v828 = vld [vmem:[%s820 + $0x38] sm:$0xff]
  %v829 = vsel %vm68, %v812, 0
  %v831 = vsel %vm68, %v814, 0
  %v833 = vsel %vm68, %v817, 0
  %v835 = vsel %vm68, %v819, 0
  %837 = vmatprep.subr.mxu0 0.0
  %838 = vmatpush1.msra.mxu0 %v821
  %839 = vmatprep.subr.mxu0 0.0
  %840 = vmatpush1.msra.mxu0 %v822
  %841 = vmatprep.subr.mxu0 0.0
  %842 = vmatpush1.msra.mxu0 %v823
  %843 = vmatprep.subr.mxu0 0.0
  %844 = vmatpush1.msra.mxu0 %v824
  %845 = vmatprep.subr.mxu0 0.0
  %846 = vmatpush1.msra.mxu0 %v825
  %847 = vmatprep.subr.mxu0 0.0
  %848 = vmatpush1.msra.mxu0 %v826
  %849 = vmatprep.subr.mxu0 0.0
  %850 = vmatpush1.msra.mxu0 %v827
  %851 = vmatprep.subr.mxu0 0.0
  %852 = vmatpush1.msra.mxu0 %v828
  %853 = vmatprep.subr.mxu0 0.0
  %854 = vmatpush1.msra.mxu0 0.0
  %855 = vmatprep.subr.mxu0 0.0
  %856 = vmatpush1.msra.mxu0 0.0
  %857 = vmatprep.subr.mxu0 0.0
  %858 = vmatpush1.msra.mxu0 0.0
  %859 = vmatprep.subr.mxu0 0.0
  %860 = vmatpush1.msra.mxu0 0.0
  %861 = vmatprep.subr.mxu0 0.0
  %862 = vmatpush1.msra.mxu0 0.0
  %863 = vmatprep.subr.mxu0 0.0
  %864 = vmatpush1.msra.mxu0 0.0
  %865 = vmatprep.subr.mxu0 0.0
  %866 = vmatpush1.msra.mxu0 0.0
  %867 = vmatprep.subr.mxu0 0.0
  %868 = vmatpush1.msra.mxu0 0.0
  %869 = vmatprep.subr.mxu0 0.0
  %870 = vmatpush1.msra.mxu0 0.0
  %871 = vmatprep.subr.mxu0 0.0
  %872 = vmatpush1.msra.mxu0 0.0
  %873 = vmatprep.subr.mxu0 0.0
  %874 = vmatpush1.msra.mxu0 0.0
  %875 = vmatprep.subr.mxu0 0.0
  %876 = vmatpush1.msra.mxu0 0.0
  %877 = vmatprep.subr.mxu0 0.0
  %878 = vmatpush1.msra.mxu0 0.0
  %879 = vmatprep.subr.mxu0 0.0
  %880 = vmatpush1.msra.mxu0 0.0
  %881 = vmatprep.subr.mxu0 0.0
  %882 = vmatpush1.msra.mxu0 0.0
  %883 = vmatprep.subr.mxu0 0.0
  %884 = vmatpush1.msra.mxu0 0.0
  %885 = vmatprep.subr.mxu0 0.0
  %886 = vmatpush1.msra.mxu0 0.0
  %887 = vmatprep.subr.mxu0 0.0
  %888 = vmatpush1.msra.mxu0 0.0
  %889 = vmatprep.subr.mxu0 0.0
  %890 = vmatpush1.msra.mxu0 0.0
  %891 = vmatprep.subr.mxu0 0.0
  %892 = vmatpush1.msra.mxu0 0.0
  %893 = vmatprep.subr.mxu0 0.0
  %894 = vmatpush1.msra.mxu0 0.0
  %895 = vmatprep.subr.mxu0 0.0
  %896 = vmatpush1.msra.mxu0 0.0
  %897 = vmatprep.subr.mxu0 0.0
  %898 = vmatpush1.msra.mxu0 0.0
  %899 = vmatprep.subr.mxu0 0.0
  %900 = vmatpush1.msra.mxu0 0.0
  %901 = vmatprep.mubr.f32.mxu0 0.0
  %902 = vmatmul.mubr.f32.gmra.mrb[0].mxu0 %v829
  %v903 = vpop.f32.mrb[0].mxu0
  %v904 = vadd.f32 0.0, %v903
  %v905 = vpop.f32.mrb[0].mxu0
  %906 = vmatprep.mubr.f32.mxu0 0.0
  %907 = vmatmul.mubr.f32.gmra.mrb[0].mxu0 %v831
  %v908 = vpop.f32.mrb[0].mxu0
  %v909 = vadd.f32 0.0, %v908
  %v910 = vpop.f32.mrb[0].mxu0
  %911 = vmatprep.mubr.f32.mxu0 0.0
  %912 = vmatmul.mubr.f32.gmra.mrb[0].mxu0 %v833
  %v913 = vpop.f32.mrb[0].mxu0
  %v914 = vadd.f32 0.0, %v913
  %v915 = vpop.f32.mrb[0].mxu0
  %916 = vmatprep.mubr.f32.mxu0 0.0
  %917 = vmatmul.mubr.f32.gmra.mrb[0].mxu0 %v835
  %v918 = vpop.f32.mrb[0].mxu0
  %v919 = vadd.f32 0.0, %v918
  %v920 = vpop.f32.mrb[0].mxu0
  %921 = vdwg.mxu0
  %v922 = vadd.f32 %v806, %v904
  %v923 = vadd.f32 %v807, %v909
  %v924 = vadd.f32 %v808, %v914
  %v925 = vadd.f32 %v809, %v919
  %vm926 = vcmask 1044480
  %v927 = vrot.slane %v574, 3
  %v928 = vrot.slane %v561, 3
  %v929 = vsel %vm926, %v927, %v928
  %v930 = vrot.slane %v576, 3
  %v931 = vsel %vm926, %v928, %v930
  %v932 = vrot.slane %v575, 3
  %v933 = vrot.slane %v567, 3
  %v934 = vsel %vm926, %v932, %v933
  %v935 = vrot.slane %v577, 3
  %v936 = vsel %vm926, %v933, %v935
  %s937 = scalar_lea.vmem %s5, 192
  %v938 = vld [vmem:[%s937] sm:$0xff]
  %v939 = vld [vmem:[%s937 + $0x8] sm:$0xff]
  %v940 = vld [vmem:[%s937 + $0x10] sm:$0xff]
  %v941 = vld [vmem:[%s937 + $0x18] sm:$0xff]
  %v942 = vld [vmem:[%s937 + $0x20] sm:$0xff]
  %v943 = vld [vmem:[%s937 + $0x28] sm:$0xff]
  %v944 = vld [vmem:[%s937 + $0x30] sm:$0xff]
  %v945 = vld [vmem:[%s937 + $0x38] sm:$0xff]
  %v946 = vsel %vm68, %v929, 0
  %v948 = vsel %vm68, %v931, 0
  %v950 = vsel %vm68, %v934, 0
  %v952 = vsel %vm68, %v936, 0
  %954 = vmatprep.subr.mxu0 0.0
  %955 = vmatpush1.msra.mxu0 %v938
  %956 = vmatprep.subr.mxu0 0.0
  %957 = vmatpush1.msra.mxu0 %v939
  %958 = vmatprep.subr.mxu0 0.0
  %959 = vmatpush1.msra.mxu0 %v940
  %960 = vmatprep.subr.mxu0 0.0
  %961 = vmatpush1.msra.mxu0 %v941
  %962 = vmatprep.subr.mxu0 0.0
  %963 = vmatpush1.msra.mxu0 %v942
  %964 = vmatprep.subr.mxu0 0.0
  %965 = vmatpush1.msra.mxu0 %v943
  %966 = vmatprep.subr.mxu0 0.0
  %967 = vmatpush1.msra.mxu0 %v944
  %968 = vmatprep.subr.mxu0 0.0
  %969 = vmatpush1.msra.mxu0 %v945
  %970 = vmatprep.subr.mxu0 0.0
  %971 = vmatpush1.msra.mxu0 0.0
  %972 = vmatprep.subr.mxu0 0.0
  %973 = vmatpush1.msra.mxu0 0.0
  %974 = vmatprep.subr.mxu0 0.0
  %975 = vmatpush1.msra.mxu0 0.0
  %976 = vmatprep.subr.mxu0 0.0
  %977 = vmatpush1.msra.mxu0 0.0
  %978 = vmatprep.subr.mxu0 0.0
  %979 = vmatpush1.msra.mxu0 0.0
  %980 = vmatprep.subr.mxu0 0.0
  %981 = vmatpush1.msra.mxu0 0.0
  %982 = vmatprep.subr.mxu0 0.0
  %983 = vmatpush1.msra.mxu0 0.0
  %984 = vmatprep.subr.mxu0 0.0
  %985 = vmatpush1.msra.mxu0 0.0
  %986 = vmatprep.subr.mxu0 0.0
  %987 = vmatpush1.msra.mxu0 0.0
  %988 = vmatprep.subr.mxu0 0.0
  %989 = vmatpush1.msra.mxu0 0.0
  %990 = vmatprep.subr.mxu0 0.0
  %991 = vmatpush1.msra.mxu0 0.0
  %992 = vmatprep.subr.mxu0 0.0
  %993 = vmatpush1.msra.mxu0 0.0
  %994 = vmatprep.subr.mxu0 0.0
  %995 = vmatpush1.msra.mxu0 0.0
  %996 = vmatprep.subr.mxu0 0.0
  %997 = vmatpush1.msra.mxu0 0.0
  %998 = vmatprep.subr.mxu0 0.0
  %999 = vmatpush1.msra.mxu0 0.0
  %1000 = vmatprep.subr.mxu0 0.0
  %1001 = vmatpush1.msra.mxu0 0.0
  %1002 = vmatprep.subr.mxu0 0.0
  %1003 = vmatpush1.msra.mxu0 0.0
  %1004 = vmatprep.subr.mxu0 0.0
  %1005 = vmatpush1.msra.mxu0 0.0
  %1006 = vmatprep.subr.mxu0 0.0
  %1007 = vmatpush1.msra.mxu0 0.0
  %1008 = vmatprep.subr.mxu0 0.0
  %1009 = vmatpush1.msra.mxu0 0.0
  %1010 = vmatprep.subr.mxu0 0.0
  %1011 = vmatpush1.msra.mxu0 0.0
  %1012 = vmatprep.subr.mxu0 0.0
  %1013 = vmatpush1.msra.mxu0 0.0
  %1014 = vmatprep.subr.mxu0 0.0
  %1015 = vmatpush1.msra.mxu0 0.0
  %1016 = vmatprep.subr.mxu0 0.0
  %1017 = vmatpush1.msra.mxu0 0.0
  %1018 = vmatprep.mubr.f32.mxu0 0.0
  %1019 = vmatmul.mubr.f32.gmra.mrb[0].mxu0 %v946
  %v1020 = vpop.f32.mrb[0].mxu0
  %v1021 = vadd.f32 0.0, %v1020
  %v1022 = vpop.f32.mrb[0].mxu0
  %1023 = vmatprep.mubr.f32.mxu0 0.0
  %1024 = vmatmul.mubr.f32.gmra.mrb[0].mxu0 %v948
  %v1025 = vpop.f32.mrb[0].mxu0
  %v1026 = vadd.f32 0.0, %v1025
  %v1027 = vpop.f32.mrb[0].mxu0
  %1028 = vmatprep.mubr.f32.mxu0 0.0
  %1029 = vmatmul.mubr.f32.gmra.mrb[0].mxu0 %v950
  %v1030 = vpop.f32.mrb[0].mxu0
  %v1031 = vadd.f32 0.0, %v1030
  %v1032 = vpop.f32.mrb[0].mxu0
  %1033 = vmatprep.mubr.f32.mxu0 0.0
  %1034 = vmatmul.mubr.f32.gmra.mrb[0].mxu0 %v952
  %v1035 = vpop.f32.mrb[0].mxu0
  %v1036 = vadd.f32 0.0, %v1035
  %v1037 = vpop.f32.mrb[0].mxu0
  %1038 = vdwg.mxu0
  %v1039 = vadd.f32 %v922, %v1021
  %v1040 = vadd.f32 %v923, %v1026
  %v1041 = vadd.f32 %v924, %v1031
  %v1042 = vadd.f32 %v925, %v1036
  %vm1043 = vcmask 1043456
  %v1044 = vrot.slane %v574, 4
  %v1045 = vrot.slane %v561, 4
  %v1046 = vsel %vm1043, %v1044, %v1045
  %v1047 = vrot.slane %v576, 4
  %v1048 = vsel %vm1043, %v1045, %v1047
  %v1049 = vrot.slane %v575, 4
  %v1050 = vrot.slane %v567, 4
  %v1051 = vsel %vm1043, %v1049, %v1050
  %v1052 = vrot.slane %v577, 4
  %v1053 = vsel %vm1043, %v1050, %v1052
  %s1054 = scalar_lea.vmem %s5, 256
  %v1055 = vld [vmem:[%s1054] sm:$0xff]
  %v1056 = vld [vmem:[%s1054 + $0x8] sm:$0xff]
  %v1057 = vld [vmem:[%s1054 + $0x10] sm:$0xff]
  %v1058 = vld [vmem:[%s1054 + $0x18] sm:$0xff]
  %v1059 = vld [vmem:[%s1054 + $0x20] sm:$0xff]
  %v1060 = vld [vmem:[%s1054 + $0x28] sm:$0xff]
  %v1061 = vld [vmem:[%s1054 + $0x30] sm:$0xff]
  %v1062 = vld [vmem:[%s1054 + $0x38] sm:$0xff]
  %v1063 = vsel %vm68, %v1046, 0
  %v1065 = vsel %vm68, %v1048, 0
  %v1067 = vsel %vm68, %v1051, 0
  %v1069 = vsel %vm68, %v1053, 0
  %1071 = vmatprep.subr.mxu0 0.0
  %1072 = vmatpush1.msra.mxu0 %v1055
  %1073 = vmatprep.subr.mxu0 0.0
  %1074 = vmatpush1.msra.mxu0 %v1056
  %1075 = vmatprep.subr.mxu0 0.0
  %1076 = vmatpush1.msra.mxu0 %v1057
  %1077 = vmatprep.subr.mxu0 0.0
  %1078 = vmatpush1.msra.mxu0 %v1058
  %1079 = vmatprep.subr.mxu0 0.0
  %1080 = vmatpush1.msra.mxu0 %v1059
  %1081 = vmatprep.subr.mxu0 0.0
  %1082 = vmatpush1.msra.mxu0 %v1060
  %1083 = vmatprep.subr.mxu0 0.0
  %1084 = vmatpush1.msra.mxu0 %v1061
  %1085 = vmatprep.subr.mxu0 0.0
  %1086 = vmatpush1.msra.mxu0 %v1062
  %1087 = vmatprep.subr.mxu0 0.0
  %1088 = vmatpush1.msra.mxu0 0.0
  %1089 = vmatprep.subr.mxu0 0.0
  %1090 = vmatpush1.msra.mxu0 0.0
  %1091 = vmatprep.subr.mxu0 0.0
  %1092 = vmatpush1.msra.mxu0 0.0
  %1093 = vmatprep.subr.mxu0 0.0
  %1094 = vmatpush1.msra.mxu0 0.0
  %1095 = vmatprep.subr.mxu0 0.0
  %1096 = vmatpush1.msra.mxu0 0.0
  %1097 = vmatprep.subr.mxu0 0.0
  %1098 = vmatpush1.msra.mxu0 0.0
  %1099 = vmatprep.subr.mxu0 0.0
  %1100 = vmatpush1.msra.mxu0 0.0
  %1101 = vmatprep.subr.mxu0 0.0
  %1102 = vmatpush1.msra.mxu0 0.0
  %1103 = vmatprep.subr.mxu0 0.0
  %1104 = vmatpush1.msra.mxu0 0.0
  %1105 = vmatprep.subr.mxu0 0.0
  %1106 = vmatpush1.msra.mxu0 0.0
  %1107 = vmatprep.subr.mxu0 0.0
  %1108 = vmatpush1.msra.mxu0 0.0
  %1109 = vmatprep.subr.mxu0 0.0
  %1110 = vmatpush1.msra.mxu0 0.0
  %1111 = vmatprep.subr.mxu0 0.0
  %1112 = vmatpush1.msra.mxu0 0.0
  %1113 = vmatprep.subr.mxu0 0.0
  %1114 = vmatpush1.msra.mxu0 0.0
  %1115 = vmatprep.subr.mxu0 0.0
  %1116 = vmatpush1.msra.mxu0 0.0
  %1117 = vmatprep.subr.mxu0 0.0
  %1118 = vmatpush1.msra.mxu0 0.0
  %1119 = vmatprep.subr.mxu0 0.0
  %1120 = vmatpush1.msra.mxu0 0.0
  %1121 = vmatprep.subr.mxu0 0.0
  %1122 = vmatpush1.msra.mxu0 0.0
  %1123 = vmatprep.subr.mxu0 0.0
  %1124 = vmatpush1.msra.mxu0 0.0
  %1125 = vmatprep.subr.mxu0 0.0
  %1126 = vmatpush1.msra.mxu0 0.0
  %1127 = vmatprep.subr.mxu0 0.0
  %1128 = vmatpush1.msra.mxu0 0.0
  %1129 = vmatprep.subr.mxu0 0.0
  %1130 = vmatpush1.msra.mxu0 0.0
  %1131 = vmatprep.subr.mxu0 0.0
  %1132 = vmatpush1.msra.mxu0 0.0
  %1133 = vmatprep.subr.mxu0 0.0
  %1134 = vmatpush1.msra.mxu0 0.0
  %1135 = vmatprep.mubr.f32.mxu0 0.0
  %1136 = vmatmul.mubr.f32.gmra.mrb[0].mxu0 %v1063
  %v1137 = vpop.f32.mrb[0].mxu0
  %v1138 = vadd.f32 0.0, %v1137
  %v1139 = vpop.f32.mrb[0].mxu0
  %1140 = vmatprep.mubr.f32.mxu0 0.0
  %1141 = vmatmul.mubr.f32.gmra.mrb[0].mxu0 %v1065
  %v1142 = vpop.f32.mrb[0].mxu0
  %v1143 = vadd.f32 0.0, %v1142
  %v1144 = vpop.f32.mrb[0].mxu0
  %1145 = vmatprep.mubr.f32.mxu0 0.0
  %1146 = vmatmul.mubr.f32.gmra.mrb[0].mxu0 %v1067
  %v1147 = vpop.f32.mrb[0].mxu0
  %v1148 = vadd.f32 0.0, %v1147
  %v1149 = vpop.f32.mrb[0].mxu0
  %1150 = vmatprep.mubr.f32.mxu0 0.0
  %1151 = vmatmul.mubr.f32.gmra.mrb[0].mxu0 %v1069
  %v1152 = vpop.f32.mrb[0].mxu0
  %v1153 = vadd.f32 0.0, %v1152
  %v1154 = vpop.f32.mrb[0].mxu0
  %1155 = vdwg.mxu0
  %v1156 = vadd.f32 %v1039, %v1138
  %v1157 = vadd.f32 %v1040, %v1143
  %v1158 = vadd.f32 %v1041, %v1148
  %v1159 = vadd.f32 %v1042, %v1153
  %v1160 = vmax.f32 %v1156, 0.0
  %v1161 = vmax.f32 %v1157, 0.0
  %v1162 = vmax.f32 %v1158, 0.0
  %v1163 = vmax.f32 %v1159, 0.0
  %1164 = vrot.lane.b32.xlu0 %v36, 4
  %v1165 = vpop.permute.xlu0 %1164
  %1166 = vrot.lane.b32.xlu0 %v37, 4
  %v1167 = vpop.permute.xlu0 %1166
  %1168 = vrot.lane.b32.xlu0 %v38, 4
  %v1169 = vpop.permute.xlu0 %1168
  %1170 = vrot.lane.b32.xlu0 %v39, 4
  %v1171 = vpop.permute.xlu0 %1170
  %vm1176 = vcmask 31744
  %v1177 = vsel %vm1176, -inf, %v1165
  %v1178 = vsel %vm1176, -inf, %v1167
  %v1179 = vsel %vm1176, -inf, %v1169
  %v1180 = vsel %vm1176, -inf, %v1171
  %vm1181 = vcmask 556032
  %v1182 = vsel %vm1181, %v1177, -inf
  %v1183 = vsel %vm1181, %v1178, -inf
  %v1184 = vsel %vm1181, %v1179, -inf
  %v1185 = vsel %vm1181, %v1180, -inf
  %v1190 = vrot.slane %v1182, 7
  %v1191 = vrot.slane %v1183, 7
  %v1192 = vsel %vm182, %v1190, %v1191
  %v1193 = vrot.slane %v1184, 7
  %v1194 = vrot.slane %v1185, 7
  %v1195 = vsel %vm182, %v1193, %v1194
  %v1202 = vsel %vm182, -inf, %v1190
  %v1203 = vsel %vm182, -inf, %v1193
  %v1204 = vsel %vm182, %v1191, -inf
  %v1205 = vsel %vm182, %v1194, -inf
  %v1206 = vmax.f32 %v36, %v1202
  %v1207 = vmax.f32 %v37, %v1192
  %v1208 = vmax.f32 %v38, %v1203
  %v1209 = vmax.f32 %v39, %v1195
  %1212 = vrot.lane.b32.xlu0 %v1202, 124
  %v1213 = vpop.permute.xlu0 %1212
  %1214 = vrot.lane.b32.xlu0 %v1192, 124
  %v1215 = vpop.permute.xlu0 %1214
  %1216 = vrot.lane.b32.xlu0 %v1203, 124
  %v1217 = vpop.permute.xlu0 %1216
  %1218 = vrot.lane.b32.xlu0 %v1195, 124
  %v1219 = vpop.permute.xlu0 %1218
  %v1224 = vmax.f32 %v1206, %v1213
  %v1225 = vmax.f32 %v1207, %v1215
  %v1226 = vmax.f32 %v1208, %v1217
  %v1227 = vmax.f32 %v1209, %v1219
  %1228 = vrot.lane.b32.xlu0 %v1202, 120
  %v1229 = vpop.permute.xlu0 %1228
  %1230 = vrot.lane.b32.xlu0 %v1192, 120
  %v1231 = vpop.permute.xlu0 %1230
  %1232 = vrot.lane.b32.xlu0 %v1203, 120
  %v1233 = vpop.permute.xlu0 %1232
  %1234 = vrot.lane.b32.xlu0 %v1195, 120
  %v1235 = vpop.permute.xlu0 %1234
  %v1240 = vmax.f32 %v1224, %v1229
  %v1241 = vmax.f32 %v1225, %v1231
  %v1242 = vmax.f32 %v1226, %v1233
  %v1243 = vmax.f32 %v1227, %v1235
  %v1246 = vrot.slane %v1202, 1
  %v1247 = vrot.slane %v1192, 1
  %v1248 = vsel %vm313, %v1246, %v1247
  %v1249 = vrot.slane %v1204, 1
  %v1250 = vsel %vm313, %v1247, %v1249
  %v1251 = vrot.slane %v1203, 1
  %v1252 = vrot.slane %v1195, 1
  %v1253 = vsel %vm313, %v1251, %v1252
  %v1254 = vrot.slane %v1205, 1
  %v1255 = vsel %vm313, %v1252, %v1254
  %v1260 = vmax.f32 %v1240, %v1248
  %v1261 = vmax.f32 %v1241, %v1250
  %v1262 = vmax.f32 %v1242, %v1253
  %v1263 = vmax.f32 %v1243, %v1255
  %1264 = vrot.lane.b32.xlu0 %v1248, 120
  %v1265 = vpop.permute.xlu0 %1264
  %1266 = vrot.lane.b32.xlu0 %v1250, 120
  %v1267 = vpop.permute.xlu0 %1266
  %1268 = vrot.lane.b32.xlu0 %v1253, 120
  %v1269 = vpop.permute.xlu0 %1268
  %1270 = vrot.lane.b32.xlu0 %v1255, 120
  %v1271 = vpop.permute.xlu0 %1270
  %v1276 = vmax.f32 %v1260, %v1265
  %v1277 = vmax.f32 %v1261, %v1267
  %v1278 = vmax.f32 %v1262, %v1269
  %v1279 = vmax.f32 %v1263, %v1271
  %v1280 = vrot.slane %v1202, 2
  %v1281 = vrot.slane %v1192, 2
  %v1282 = vsel %vm430, %v1280, %v1281
  %v1283 = vrot.slane %v1204, 2
  %v1284 = vsel %vm430, %v1281, %v1283
  %v1285 = vrot.slane %v1203, 2
  %v1286 = vrot.slane %v1195, 2
  %v1287 = vsel %vm430, %v1285, %v1286
  %v1288 = vrot.slane %v1205, 2
  %v1289 = vsel %vm430, %v1286, %v1288
  %v1294 = vmax.f32 %v1276, %v1282
  %v1295 = vmax.f32 %v1277, %v1284
  %v1296 = vmax.f32 %v1278, %v1287
  %v1297 = vmax.f32 %v1279, %v1289
  %1298 = vrot.lane.b32.xlu0 %v1282, 124
  %v1299 = vpop.permute.xlu0 %1298
  %1300 = vrot.lane.b32.xlu0 %v1284, 124
  %v1301 = vpop.permute.xlu0 %1300
  %1302 = vrot.lane.b32.xlu0 %v1287, 124
  %v1303 = vpop.permute.xlu0 %1302
  %1304 = vrot.lane.b32.xlu0 %v1289, 124
  %v1305 = vpop.permute.xlu0 %1304
  %v1310 = vmax.f32 %v1294, %v1299
  %v1311 = vmax.f32 %v1295, %v1301
  %v1312 = vmax.f32 %v1296, %v1303
  %v1313 = vmax.f32 %v1297, %v1305
  %1314 = vrot.lane.b32.xlu0 %v1282, 120
  %v1315 = vpop.permute.xlu0 %1314
  %1316 = vrot.lane.b32.xlu0 %v1284, 120
  %v1317 = vpop.permute.xlu0 %1316
  %1318 = vrot.lane.b32.xlu0 %v1287, 120
  %v1319 = vpop.permute.xlu0 %1318
  %1320 = vrot.lane.b32.xlu0 %v1289, 120
  %v1321 = vpop.permute.xlu0 %1320
  %v1326 = vmax.f32 %v1310, %v1315
  %v1327 = vmax.f32 %v1311, %v1317
  %v1328 = vmax.f32 %v1312, %v1319
  %v1329 = vmax.f32 %v1313, %v1321
  %v1330 = vld [vmem:[%s7] sm:$0xff]
  %v1331 = vld [vmem:[%s7 + $0x8] sm:$0xff]
  %v1332 = vld [vmem:[%s7 + $0x10] sm:$0xff]
  %v1333 = vld [vmem:[%s7 + $0x18] sm:$0xff]
  %v1334 = vld [vmem:[%s7 + $0x20] sm:$0xff]
  %v1335 = vld [vmem:[%s7 + $0x28] sm:$0xff]
  %v1336 = vld [vmem:[%s7 + $0x30] sm:$0xff]
  %v1337 = vld [vmem:[%s7 + $0x38] sm:$0xff]
  %v1338 = vld [vmem:[%s8] sm:$0x1]
  %v1340 = vlaneseq
  %v1341 = vshrl.u32 %v1340, 7
  %v1342 = vsub.s32 0, %v1341
  %v1343 = vrot.slane %v1338, %v1342
  %v1346 = vsel %vm68, %v1326, 0
  %v1349 = vsel %vm68, %v1327, 0
  %v1352 = vsel %vm68, %v1328, 0
  %v1355 = vsel %vm68, %v1329, 0
  %1357 = vmatprep.subr.mxu0 0.0
  %1358 = vmatpush1.msra.mxu0 %v1330
  %1359 = vmatprep.subr.mxu0 0.0
  %1360 = vmatpush1.msra.mxu0 %v1331
  %1361 = vmatprep.subr.mxu0 0.0
  %1362 = vmatpush1.msra.mxu0 %v1332
  %1363 = vmatprep.subr.mxu0 0.0
  %1364 = vmatpush1.msra.mxu0 %v1333
  %1365 = vmatprep.subr.mxu0 0.0
  %1366 = vmatpush1.msra.mxu0 %v1334
  %1367 = vmatprep.subr.mxu0 0.0
  %1368 = vmatpush1.msra.mxu0 %v1335
  %1369 = vmatprep.subr.mxu0 0.0
  %1370 = vmatpush1.msra.mxu0 %v1336
  %1371 = vmatprep.subr.mxu0 0.0
  %1372 = vmatpush1.msra.mxu0 %v1337
  %1373 = vmatprep.subr.mxu0 0.0
  %1374 = vmatpush1.msra.mxu0 0.0
  %1375 = vmatprep.subr.mxu0 0.0
  %1376 = vmatpush1.msra.mxu0 0.0
  %1377 = vmatprep.subr.mxu0 0.0
  %1378 = vmatpush1.msra.mxu0 0.0
  %1379 = vmatprep.subr.mxu0 0.0
  %1380 = vmatpush1.msra.mxu0 0.0
  %1381 = vmatprep.subr.mxu0 0.0
  %1382 = vmatpush1.msra.mxu0 0.0
  %1383 = vmatprep.subr.mxu0 0.0
  %1384 = vmatpush1.msra.mxu0 0.0
  %1385 = vmatprep.subr.mxu0 0.0
  %1386 = vmatpush1.msra.mxu0 0.0
  %1387 = vmatprep.subr.mxu0 0.0
  %1388 = vmatpush1.msra.mxu0 0.0
  %1389 = vmatprep.subr.mxu0 0.0
  %1390 = vmatpush1.msra.mxu0 0.0
  %1391 = vmatprep.subr.mxu0 0.0
  %1392 = vmatpush1.msra.mxu0 0.0
  %1393 = vmatprep.subr.mxu0 0.0
  %1394 = vmatpush1.msra.mxu0 0.0
  %1395 = vmatprep.subr.mxu0 0.0
  %1396 = vmatpush1.msra.mxu0 0.0
  %1397 = vmatprep.subr.mxu0 0.0
  %1398 = vmatpush1.msra.mxu0 0.0
  %1399 = vmatprep.subr.mxu0 0.0
  %1400 = vmatpush1.msra.mxu0 0.0
  %1401 = vmatprep.subr.mxu0 0.0
  %1402 = vmatpush1.msra.mxu0 0.0
  %1403 = vmatprep.subr.mxu0 0.0
  %1404 = vmatpush1.msra.mxu0 0.0
  %1405 = vmatprep.subr.mxu0 0.0
  %1406 = vmatpush1.msra.mxu0 0.0
  %1407 = vmatprep.subr.mxu0 0.0
  %1408 = vmatpush1.msra.mxu0 0.0
  %1409 = vmatprep.subr.mxu0 0.0
  %1410 = vmatpush1.msra.mxu0 0.0
  %1411 = vmatprep.subr.mxu0 0.0
  %1412 = vmatpush1.msra.mxu0 0.0
  %1413 = vmatprep.subr.mxu0 0.0
  %1414 = vmatpush1.msra.mxu0 0.0
  %1415 = vmatprep.subr.mxu0 0.0
  %1416 = vmatpush1.msra.mxu0 0.0
  %1417 = vmatprep.subr.mxu0 0.0
  %1418 = vmatpush1.msra.mxu0 0.0
  %1419 = vmatprep.subr.mxu0 0.0
  %1420 = vmatpush1.msra.mxu0 0.0
  %1421 = vmatprep.mubr.f32.mxu0 0.0
  %1422 = vmatmul.mubr.f32.gmra.mrb[0].mxu0 %v1346
  %v1423 = vpop.f32.mrb[0].mxu0
  %v1424 = vadd.f32 %v1343, %v1423
  %v1425 = vpop.f32.mrb[0].mxu0
  %1426 = vmatprep.mubr.f32.mxu0 0.0
  %1427 = vmatmul.mubr.f32.gmra.mrb[0].mxu0 %v1349
  %v1428 = vpop.f32.mrb[0].mxu0
  %v1429 = vadd.f32 %v1343, %v1428
  %v1430 = vpop.f32.mrb[0].mxu0
  %1431 = vmatprep.mubr.f32.mxu0 0.0
  %1432 = vmatmul.mubr.f32.gmra.mrb[0].mxu0 %v1352
  %v1433 = vpop.f32.mrb[0].mxu0
  %v1434 = vadd.f32 %v1343, %v1433
  %v1435 = vpop.f32.mrb[0].mxu0
  %1436 = vmatprep.mubr.f32.mxu0 0.0
  %1437 = vmatmul.mubr.f32.gmra.mrb[0].mxu0 %v1355
  %v1438 = vpop.f32.mrb[0].mxu0
  %v1439 = vadd.f32 %v1343, %v1438
  %v1440 = vpop.f32.mrb[0].mxu0
  %1441 = vdwg.mxu0
  %v1442 = vmax.f32 %v1424, 0.0
  %v1443 = vmax.f32 %v1429, 0.0
  %v1444 = vmax.f32 %v1434, 0.0
  %v1445 = vmax.f32 %v1439, 0.0
  %1446 = vst [vmem:[%s9] sm:$0xff] %v170
  %1447 = vst [vmem:[%s9 + $0x8] sm:$0xff] %v172
  %1448 = vst [vmem:[%s9 + $0x10] sm:$0xff] %v174
  %1449 = vst [vmem:[%s9 + $0x18] sm:$0xff] %v176
  %1450 = vst [vmem:[%s10] sm:$0xff] %v547
  %1451 = vst [vmem:[%s10 + $0x8] sm:$0xff] %v548
  %1452 = vst [vmem:[%s10 + $0x10] sm:$0xff] %v549
  %1453 = vst [vmem:[%s10 + $0x18] sm:$0xff] %v550
  %1454 = vst [vmem:[%s11] sm:$0xff] %v1160
  %1455 = vst [vmem:[%s11 + $0x8] sm:$0xff] %v1161
  %1456 = vst [vmem:[%s11 + $0x10] sm:$0xff] %v1162
  %1457 = vst [vmem:[%s11 + $0x18] sm:$0xff] %v1163
  %1458 = vst [vmem:[%s12] sm:$0xff] %v1442
  %1459 = vst [vmem:[%s12 + $0x8] sm:$0xff] %v1443
  %1460 = vst [vmem:[%s12 + $0x10] sm:$0xff] %v1444
  %1461 = vst [vmem:[%s12 + $0x18] sm:$0xff] %v1445
  // Predicated region
  $region38: #{inception_block.1} parent=0 // pred_check
    _
  $region39: #{inception_block.1} parent=0 // pred_check_branch
    %1463 = sbr.rel (0) target = $region41
  $region40: #{inception_block.1} parent=0 // pred_region
    _
  $region41: #{inception_block.1} parent=0 // pred_fallthru
    _
  // Predicated region
  $region42: #{inception_block.1} parent=0 // pred_check
    _
  $region43: #{inception_block.1} parent=0 // pred_check_branch
    %1465 = sbr.rel (0) target = $region45
  $region44: #{inception_block.1} parent=0 // pred_region
    _
  $region45: #{inception_block.1} parent=0 // pred_fallthru
    _
  // Predicated region
  $region46: #{inception_block.1} parent=0 // pred_check
    _
  $region47: #{inception_block.1} parent=0 // pred_check_branch
    %1467 = sbr.rel (0) target = $region49
  $region48: #{inception_block.1} parent=0 // pred_region
    _
  $region49: #{inception_block.1} parent=0 // pred_fallthru
    _
  // Predicated region
  $region50: #{inception_block.1} parent=0 // pred_check
    _
  $region51: #{inception_block.1} parent=0 // pred_check_branch
    %1469 = sbr.rel (0) target = $region53
  $region52: #{inception_block.1} parent=0 // pred_region
    _
  $region53: #{inception_block.1} parent=0 // pred_fallthru
    _
  // Predicated region
  $region54: #{inception_block.1} parent=0 // pred_check
    _
  $region55: #{inception_block.1} parent=0 // pred_check_branch
    %1471 = sbr.rel (0) target = $region57
  $region56: #{inception_block.1} parent=0 // pred_region
    _
  $region57: #{inception_block.1} parent=0 // pred_fallthru
    _
  // Predicated region
  $region58: #{inception_block.1} parent=0 // pred_check
    _
  $region59: #{inception_block.1} parent=0 // pred_check_branch
    %1473 = sbr.rel (0) target = $region61
  $region60: #{inception_block.1} parent=0 // pred_region
    _
  $region61: #{inception_block.1} parent=0 // pred_fallthru
    _
  // Predicated region
  $region62: #{inception_block.1} parent=0 // pred_check
    _
  $region63: #{inception_block.1} parent=0 // pred_check_branch
    %1475 = sbr.rel (0) target = $region65
  $region64: #{inception_block.1} parent=0 // pred_region
    _
  $region65: #{inception_block.1} parent=0 // pred_fallthru
    _
  // Predicated region
  $region66: #{inception_block.1} parent=0 // pred_check
    _
  $region67: #{inception_block.1} parent=0 // pred_check_branch
    %1477 = sbr.rel (0) target = $region69
  $region68: #{inception_block.1} parent=0 // pred_region
    _
  $region69: #{inception_block.1} parent=0 // pred_fallthru
    _

</llo_original>
